<compile_context>
chip_gen: v7x
topology: tpu7x:2x2x1
jax: 0.10.0
libtpu: 0.0.40
codegen_flags: <defaults>
</compile_context>

<pallas_src>
import functools

import numpy as np

import jax
import jax.numpy as jnp
from jax.experimental import pallas as pl
from jax.experimental.pallas import tpu as pltpu

BN_EPS = 1e-5

_CPARAMS = pltpu.CompilerParams(
    dimension_semantics=("arbitrary",),
    vmem_limit_bytes=32 * 1024 * 1024,
)


# ------------------------------------------------------------------------------ helpers
def _nlin(x, nl):
    if nl == "RE":
        return jnp.maximum(x, 0.0)
    if nl == "HS":
        # use_hard = False in the reference => Hswish(x) == x * sigmoid(x)
        return x * jax.nn.sigmoid(x)
    # TODO(synk): nl == 'PRE' (per-channel PReLU with learnable alpha) not implemented.
    raise NotImplementedError(nl)


def _bn_lanes(z, gamma, beta):
    """Exact training-mode BatchNorm over the lane (N*H*W) axis of a (C, L) slab.

    Two-pass (centered) variance -> no E[x^2]-mean^2 cancellation; biased var, eps=1e-5.
    gamma/beta are (C, 1) columns.
    """
    mu = jnp.mean(z, axis=1, keepdims=True)
    zc = z - mu
    var = jnp.mean(zc * zc, axis=1, keepdims=True)
    return zc * (gamma * jax.lax.rsqrt(var + BN_EPS)) + beta


def _full_spec(shape):
    """Whole-array VMEM block for a grid=(1,) call."""
    zeros = (0,) * len(shape)
    return pl.BlockSpec(tuple(shape), lambda *_: zeros)


def _make_dw_masks(K, H, W):
    """Static (K*K, H*W) 0/1 masks: which lanes are in-image for each depthwise tap."""
    pad = (K - 1) // 2
    hh, ww = np.meshgrid(np.arange(H), np.arange(W), indexing="ij")
    hh = hh.reshape(-1)
    ww = ww.reshape(-1)
    masks = np.zeros((K * K, H * W), np.float32)
    for dh in range(K):
        for dw in range(K):
            hv = hh + dh - pad
            wv = ww + dw - pad
            masks[dh * K + dw] = (hv >= 0) & (hv < H) & (wv >= 0) & (wv < W)
    return jnp.asarray(masks)


# ------------------------------------------------------------------------------- kernel
def _block_pass_kernel(x_ref, pw_w_ref, pw_g_ref, pw_b_ref,
                       coef_ref, dw_g_ref, dw_b_ref,
                       seg_ref, segT_ref, se_w1_ref, se_w2_ref,
                       pwl_w_ref, pwl_g_ref, pwl_b_ref,
                       o_ref, *, K, W, HW, nl, se, add_residual):
    """One full MobileBottleneck pass on a (C, N*H*W) slab, BN stats computed in-kernel."""
    x = x_ref[...]                                                        # (Cin, L) f32

    # ---- 1x1 expand conv (MXU) + BN + nlin ------------------------------------------
    z = jnp.dot(pw_w_ref[...], x, preferred_element_type=jnp.float32)    # (Ce, L)
    y = _nlin(_bn_lanes(z, pw_g_ref[...], pw_b_ref[...]), nl)

    # ---- depthwise KxK stride-1 'same' conv: lane rolls + mask-folded coefficients ---
    L = y.shape[-1]
    pad = (K - 1) // 2
    acc = jnp.zeros_like(y)
    for dh in range(K):                                  # static K*K tap loop (VPU MACs)
        for dw in range(K):
            idx = dh * K + dw
            s = (dh - pad) * W + (dw - pad)              # flattened tap offset
            # tap[p] = y[p + s]; wrapped / out-of-image lanes are zeroed via coef.
            rolled = y if s == 0 else pltpu.roll(y, shift=(-s) % L, axis=1)
            acc = acc + rolled * coef_ref[idx]           # 1 mul + 1 add per tap
    y = _bn_lanes(acc, dw_g_ref[...], dw_b_ref[...])

    # ---- squeeze-excite (batched over N via segment-indicator matmuls) ---------------
    if se:
        pooled = jnp.dot(y, segT_ref[...],
                         preferred_element_type=jnp.float32) * (1.0 / HW)   # (Ce, N)
        h = jnp.maximum(
            jnp.dot(se_w1_ref[...], pooled, preferred_element_type=jnp.float32), 0.0)
        g = jax.nn.sigmoid(
            jnp.dot(se_w2_ref[...], h, preferred_element_type=jnp.float32))  # (Ce, N)
        y = y * jnp.dot(g, seg_ref[...],
                        preferred_element_type=jnp.float32)  # per-sample lane broadcast
    y = _nlin(y, nl)

    # ---- 1x1 linear conv (MXU) + BN (+ fused residual add) ---------------------------
    z = jnp.dot(pwl_w_ref[...], y, preferred_element_type=jnp.float32)   # (Cout, L)
    out = _bn_lanes(z, pwl_g_ref[...], pwl_b_ref[...])
    if add_residual:
        out = out + x
    o_ref[...] = out


# ------------------------------------------------------------------------------ forward
def mobile_bottleneck(x_nchw, params, *, kernel, stride, se, nl, inp, oup, exp):
    assert stride in (1, 2) and kernel in (3, 5)
    assert stride == 1  # TODO(synk): stride=2 depthwise downsampling path not implemented.
    N, Cin, H, W = x_nchw.shape
    assert Cin == inp
    HW = H * W
    L = N * HW
    use_res_connect = (stride == 1 and inp == oup)

    # (N, Cin, H, W) -> (Cin, N*H*W): channels on sublanes, batch folded into lanes.
    x = jnp.transpose(x_nchw, (1, 0, 2, 3)).reshape(Cin, L).astype(jnp.float32)

    # Depthwise coefficients with the boundary mask pre-folded (review item).
    masks = _make_dw_masks(kernel, H, W)                      # (K*K, HW)
    masks_l = jnp.tile(masks, (1, N))                         # (K*K, L) -- same per sample
    coef = params["dw_w"].T[:, :, None] * masks_l[:, None, :]  # (K*K, exp, L)

    # Per-sample segment indicators for SE pooling / broadcast.
    seg = jnp.repeat(jnp.eye(N, dtype=jnp.float32), HW, axis=1)   # (N, L)
    segT = seg.T                                                   # (L, N)

    col = lambda v: v.reshape(-1, 1).astype(jnp.float32)
    weights = (
        params["pw_w"].astype(jnp.float32), col(params["pw_g"]), col(params["pw_b"]),
        coef.astype(jnp.float32), col(params["dw_g"]), col(params["dw_b"]),
        seg, segT,
        params["se_w1"].astype(jnp.float32), params["se_w2"].astype(jnp.float32),
        params["pwl_w"].astype(jnp.float32), col(params["pwl_g"]), col(params["pwl_b"]),
    )

    def block_pass(a, add_residual):
        # NOTE: the reference's torch.isnan(...).any().item() guards are host-side runtime
        # asserts with no kernel-side equivalent; they are omitted.
        ins = (a,) + weights
        return pl.pallas_call(
            functools.partial(_block_pass_kernel, K=kernel, W=W, HW=HW, nl=nl, se=se,
                              add_residual=add_residual),
            grid=(1,),
            in_specs=[_full_spec(v.shape) for v in ins],
            out_specs=_full_spec((oup, L)),
            out_shape=jax.ShapeDtypeStruct((oup, L), jnp.float32),
            compiler_params=_CPARAMS,
        )(*ins)

    res = block_pass(x, use_res_connect)          # pass 1: x + block(x) (or block(x))
    if use_res_connect:
        res = block_pass(res, True)               # pass 2: res + block(res)
    return jnp.transpose(res.reshape(oup, N, H, W), (1, 0, 2, 3))


def init_params(key, inp, oup, exp, kernel, reduction=4):
    ks = jax.random.split(key, 11)

    def n(k, shape, scale):
        return (scale * jax.random.normal(k, shape)).astype(jnp.float32)

    return dict(
        # pw_conv weight (exp, inp, 1, 1) -> (exp, inp)   [PyTorch-native layout]
        pw_w=n(ks[0], (exp, inp), 1.0 / (inp ** 0.5)),
        pw_g=1.0 + n(ks[1], (exp,), 0.1),
        pw_b=n(ks[2], (exp,), 0.1),
        # dw_conv weight (exp, 1, K, K) -> (exp, K*K)
        dw_w=n(ks[3], (exp, kernel * kernel), 1.0 / kernel),
        dw_g=1.0 + n(ks[4], (exp,), 0.1),
        dw_b=n(ks[5], (exp,), 0.1),
        # SEModule fc: Linear(exp, exp//r) weight (exp//r, exp); Linear(exp//r, exp) weight (exp, exp//r)
        se_w1=n(ks[6], (exp // reduction, exp), 1.0 / (exp ** 0.5)),
        se_w2=n(ks[7], (exp, exp // reduction), 1.0 / ((exp // reduction) ** 0.5)),
        # pwl_conv weight (oup, exp, 1, 1) -> (oup, exp)
        pwl_w=n(ks[8], (oup, exp), 1.0 / (exp ** 0.5)),
        pwl_g=1.0 + n(ks[9], (oup,), 0.1),
        pwl_b=n(ks[10], (oup,), 0.1),
    )


def _reference_forward(x, params, *, kernel, stride, se, nl, inp, oup, exp):
    """Pure-JAX f32 mirror of the PyTorch module (train-mode BN, biased variance)."""
    def bn(v, g, b):
        m = jnp.mean(v, axis=(0, 2, 3), keepdims=True)
        var = jnp.mean(jnp.square(v - m), axis=(0, 2, 3), keepdims=True)
        return (v - m) * jax.lax.rsqrt(var + BN_EPS) * g.reshape(1, -1, 1, 1) \
            + b.reshape(1, -1, 1, 1)

    def nlin(v):
        return jnp.maximum(v, 0.0) if nl == "RE" else v * jax.nn.sigmoid(v)

    def block(a):
        z = jnp.einsum("oc,nchw->nohw", params["pw_w"], a)
        z = nlin(bn(z, params["pw_g"], params["pw_b"]))
        dw_w = params["dw_w"].reshape(exp, 1, kernel, kernel)
        z = jax.lax.conv_general_dilated(
            z, dw_w, window_strides=(stride, stride), padding="SAME",
            feature_group_count=exp, dimension_numbers=("NCHW", "OIHW", "NCHW"))
        z = bn(z, params["dw_g"], params["dw_b"])
        if se:
            y = jnp.mean(z, axis=(2, 3))
            y = jnp.maximum(y @ params["se_w1"].T, 0.0)
            y = jax.nn.sigmoid(y @ params["se_w2"].T)
            z = z * y[:, :, None, None]
        z = nlin(z)
        z = jnp.einsum("oc,nchw->nohw", params["pwl_w"], z)
        return bn(z, params["pwl_g"], params["pwl_b"])

    use_res = stride == 1 and inp == oup
    res = x + block(x) if use_res else block(x)
    if use_res:
        res = res + block(res)
    return res


if __name__ == "__main__":
    # MobileBottleneck(inp=8, oup=8, kernel=3, stride=1, exp=16, se=True, nl='HS')
    # -> exercises the use_res_connect path (residual + second pass of the block).
    N, INP, OUP, EXP, H, W = 2, 8, 8, 16, 16, 16
    KERNEL, STRIDE, SE, NL = 3, 1, True, "HS"

    key = jax.random.PRNGKey(0)
    kx, kp = jax.random.split(key)
    x_nchw = jax.random.normal(kx, (N, INP, H, W), jnp.float32)  # PyTorch NCHW input
    params = init_params(kp, INP, OUP, EXP, KERNEL)

    fwd = jax.jit(functools.partial(mobile_bottleneck, kernel=KERNEL, stride=STRIDE,
                                    se=SE, nl=NL, inp=INP, oup=OUP, exp=EXP))
    out = jax.block_until_ready(fwd(x_nchw, params))

    assert out.shape == (N, OUP, H, W), out.shape
    assert bool(jnp.all(jnp.isfinite(out)))

    ref = _reference_forward(x_nchw, params, kernel=KERNEL, stride=STRIDE,
                             se=SE, nl=NL, inp=INP, oup=OUP, exp=EXP)
    err = float(jnp.max(jnp.abs(out - ref)))
    scale = float(jnp.max(jnp.abs(ref)))
    # all-f32 in-kernel math; tolerance covers MXU matmul precision differences only.
    assert err <= 0.05 * scale + 1e-2, (err, scale)
    print("KERNEL_OK")
</pallas_src>

<mosaic_0001>
module attributes {stable_mosaic.version = 11 : i64} {
  func.func @_block_pass_kernel(%arg0: i32, %arg1: memref<8x512xf32, #tpu.memory_space<vmem>>, %arg2: memref<16x8xf32, #tpu.memory_space<vmem>>, %arg3: memref<16x1xf32, #tpu.memory_space<vmem>>, %arg4: memref<16x1xf32, #tpu.memory_space<vmem>>, %arg5: memref<9x16x512xf32, #tpu.memory_space<vmem>>, %arg6: memref<16x1xf32, #tpu.memory_space<vmem>>, %arg7: memref<16x1xf32, #tpu.memory_space<vmem>>, %arg8: memref<2x512xf32, #tpu.memory_space<vmem>>, %arg9: memref<512x2xf32, #tpu.memory_space<vmem>>, %arg10: memref<4x16xf32, #tpu.memory_space<vmem>>, %arg11: memref<16x4xf32, #tpu.memory_space<vmem>>, %arg12: memref<8x16xf32, #tpu.memory_space<vmem>>, %arg13: memref<8x1xf32, #tpu.memory_space<vmem>>, %arg14: memref<8x1xf32, #tpu.memory_space<vmem>>, %arg15: memref<8x512xf32, #tpu.memory_space<vmem>>) attributes {dimension_semantics = [#tpu.dimension_semantics<arbitrary>], iteration_bounds = array<i64: 1>, scalar_prefetch = 0 : i64, scratch_operands = 0 : i64, tpu.core_type = #tpu.core_type<tc>, window_params = [{pipeline_mode = #tpu.pipeline_mode<synchronous>, transform_indices = @transform_0, window_bounds = array<i64: 8, 512>}, {pipeline_mode = #tpu.pipeline_mode<synchronous>, transform_indices = @transform_1, window_bounds = array<i64: 16, 8>}, {pipeline_mode = #tpu.pipeline_mode<synchronous>, transform_indices = @transform_2, window_bounds = array<i64: 16, 1>}, {pipeline_mode = #tpu.pipeline_mode<synchronous>, transform_indices = @transform_3, window_bounds = array<i64: 16, 1>}, {pipeline_mode = #tpu.pipeline_mode<synchronous>, transform_indices = @transform_4, window_bounds = array<i64: 9, 16, 512>}, {pipeline_mode = #tpu.pipeline_mode<synchronous>, transform_indices = @transform_5, window_bounds = array<i64: 16, 1>}, {pipeline_mode = #tpu.pipeline_mode<synchronous>, transform_indices = @transform_6, window_bounds = array<i64: 16, 1>}, {pipeline_mode = #tpu.pipeline_mode<synchronous>, transform_indices = @transform_7, window_bounds = array<i64: 2, 512>}, {pipeline_mode = #tpu.pipeline_mode<synchronous>, transform_indices = @transform_8, window_bounds = array<i64: 512, 2>}, {pipeline_mode = #tpu.pipeline_mode<synchronous>, transform_indices = @transform_9, window_bounds = array<i64: 4, 16>}, {pipeline_mode = #tpu.pipeline_mode<synchronous>, transform_indices = @transform_10, window_bounds = array<i64: 16, 4>}, {pipeline_mode = #tpu.pipeline_mode<synchronous>, transform_indices = @transform_11, window_bounds = array<i64: 8, 16>}, {pipeline_mode = #tpu.pipeline_mode<synchronous>, transform_indices = @transform_12, window_bounds = array<i64: 8, 1>}, {pipeline_mode = #tpu.pipeline_mode<synchronous>, transform_indices = @transform_13, window_bounds = array<i64: 8, 1>}, {pipeline_mode = #tpu.pipeline_mode<synchronous>, transform_indices = @transform_14, window_bounds = array<i64: 8, 512>}]} {
    %c0 = arith.constant 0 : index
    %c0_0 = arith.constant 0 : index
    %0 = vector.load %arg1[%c0, %c0_0] : memref<8x512xf32, #tpu.memory_space<vmem>>, vector<8x512xf32>
    %c0_1 = arith.constant 0 : index
    %c0_2 = arith.constant 0 : index
    %1 = vector.load %arg2[%c0_1, %c0_2] : memref<16x8xf32, #tpu.memory_space<vmem>>, vector<16x8xf32>
    %cst = arith.constant dense<0.000000e+00> : vector<16x512xf32>
    %2 = tpu.matmul %1, %0, %cst {dimension_numbers = #tpu.dot_dimension_numbers<[1], [0], [0], [1], [0, 0, 1, 1], [], []>} : vector<16x8xf32>, vector<8x512xf32>, vector<16x512xf32> -> vector<16x512xf32>
    %c0_3 = arith.constant 0 : index
    %c0_4 = arith.constant 0 : index
    %3 = vector.load %arg3[%c0_3, %c0_4] : memref<16x1xf32, #tpu.memory_space<vmem>>, vector<16x1xf32>
    %c0_5 = arith.constant 0 : index
    %c0_6 = arith.constant 0 : index
    %4 = vector.load %arg4[%c0_5, %c0_6] : memref<16x1xf32, #tpu.memory_space<vmem>>, vector<16x1xf32>
    %cst_7 = arith.constant dense<0.000000e+00> : vector<16xf32>
    %5 = vector.multi_reduction <add>, %2, %cst_7 [1] : vector<16x512xf32> to vector<16xf32>
    %6 = vector.shape_cast %5 : vector<16xf32> to vector<16x1xf32>
    %cst_8 = arith.constant 5.120000e+02 : f32
    %7 = vector.broadcast %cst_8 : f32 to vector<16x1xf32>
    %8 = arith.divf %6, %7 : vector<16x1xf32>
    %9 = vector.broadcast %8 : vector<16x1xf32> to vector<16x512xf32>
    %10 = arith.subf %2, %9 : vector<16x512xf32>
    %11 = arith.mulf %10, %10 : vector<16x512xf32>
    %cst_9 = arith.constant dense<0.000000e+00> : vector<16xf32>
    %12 = vector.multi_reduction <add>, %11, %cst_9 [1] : vector<16x512xf32> to vector<16xf32>
    %13 = vector.shape_cast %12 : vector<16xf32> to vector<16x1xf32>
    %cst_10 = arith.constant 5.120000e+02 : f32
    %14 = vector.broadcast %cst_10 : f32 to vector<16x1xf32>
    %15 = arith.divf %13, %14 : vector<16x1xf32>
    %cst_11 = arith.constant 9.99999974E-6 : f32
    %16 = vector.broadcast %cst_11 : f32 to vector<16x1xf32>
    %17 = arith.addf %15, %16 : vector<16x1xf32>
    %18 = math.rsqrt %17 : vector<16x1xf32>
    %19 = arith.mulf %3, %18 : vector<16x1xf32>
    %20 = vector.broadcast %19 : vector<16x1xf32> to vector<16x512xf32>
    %21 = arith.mulf %10, %20 : vector<16x512xf32>
    %22 = vector.broadcast %4 : vector<16x1xf32> to vector<16x512xf32>
    %23 = arith.addf %21, %22 : vector<16x512xf32>
    %24 = arith.negf %23 : vector<16x512xf32>
    %25 = math.exp %24 : vector<16x512xf32>
    %cst_12 = arith.constant 1.000000e+00 : f32
    %26 = vector.broadcast %cst_12 : f32 to vector<16x512xf32>
    %27 = arith.addf %26, %25 : vector<16x512xf32>
    %28 = arith.divf %26, %27 : vector<16x512xf32>
    %29 = arith.mulf %23, %28 : vector<16x512xf32>
    %cst_13 = arith.constant 0.000000e+00 : f32
    %30 = vector.broadcast %cst_13 : f32 to vector<16x512xf32>
    %c17_i32 = arith.constant 17 : i32
    %31 = tpu.dynamic_rotate %29 by %c17_i32 dim 1 : vector<16x512xf32>, i32 -> vector<16x512xf32>
    %c0_14 = arith.constant 0 : index
    %c0_15 = arith.constant 0 : index
    %c0_16 = arith.constant 0 : index
    %32 = vector.load %arg5[%c0_14, %c0_15, %c0_16] : memref<9x16x512xf32, #tpu.memory_space<vmem>>, vector<1x16x512xf32>
    %33 = vector.shape_cast %32 : vector<1x16x512xf32> to vector<16x512xf32>
    %34 = arith.mulf %31, %33 : vector<16x512xf32>
    %35 = arith.addf %30, %34 : vector<16x512xf32>
    %c16_i32 = arith.constant 16 : i32
    %36 = tpu.dynamic_rotate %29 by %c16_i32 dim 1 : vector<16x512xf32>, i32 -> vector<16x512xf32>
    %c1 = arith.constant 1 : index
    %c0_17 = arith.constant 0 : index
    %c0_18 = arith.constant 0 : index
    %37 = vector.load %arg5[%c1, %c0_17, %c0_18] : memref<9x16x512xf32, #tpu.memory_space<vmem>>, vector<1x16x512xf32>
    %38 = vector.shape_cast %37 : vector<1x16x512xf32> to vector<16x512xf32>
    %39 = arith.mulf %36, %38 : vector<16x512xf32>
    %40 = arith.addf %35, %39 : vector<16x512xf32>
    %c15_i32 = arith.constant 15 : i32
    %41 = tpu.dynamic_rotate %29 by %c15_i32 dim 1 : vector<16x512xf32>, i32 -> vector<16x512xf32>
    %c2 = arith.constant 2 : index
    %c0_19 = arith.constant 0 : index
    %c0_20 = arith.constant 0 : index
    %42 = vector.load %arg5[%c2, %c0_19, %c0_20] : memref<9x16x512xf32, #tpu.memory_space<vmem>>, vector<1x16x512xf32>
    %43 = vector.shape_cast %42 : vector<1x16x512xf32> to vector<16x512xf32>
    %44 = arith.mulf %41, %43 : vector<16x512xf32>
    %45 = arith.addf %40, %44 : vector<16x512xf32>
    %c1_i32 = arith.constant 1 : i32
    %46 = tpu.dynamic_rotate %29 by %c1_i32 dim 1 : vector<16x512xf32>, i32 -> vector<16x512xf32>
    %c3 = arith.constant 3 : index
    %c0_21 = arith.constant 0 : index
    %c0_22 = arith.constant 0 : index
    %47 = vector.load %arg5[%c3, %c0_21, %c0_22] : memref<9x16x512xf32, #tpu.memory_space<vmem>>, vector<1x16x512xf32>
    %48 = vector.shape_cast %47 : vector<1x16x512xf32> to vector<16x512xf32>
    %49 = arith.mulf %46, %48 : vector<16x512xf32>
    %50 = arith.addf %45, %49 : vector<16x512xf32>
    %c4 = arith.constant 4 : index
    %c0_23 = arith.constant 0 : index
    %c0_24 = arith.constant 0 : index
    %51 = vector.load %arg5[%c4, %c0_23, %c0_24] : memref<9x16x512xf32, #tpu.memory_space<vmem>>, vector<1x16x512xf32>
    %52 = vector.shape_cast %51 : vector<1x16x512xf32> to vector<16x512xf32>
    %53 = arith.mulf %29, %52 : vector<16x512xf32>
    %54 = arith.addf %50, %53 : vector<16x512xf32>
    %c511_i32 = arith.constant 511 : i32
    %55 = tpu.dynamic_rotate %29 by %c511_i32 dim 1 : vector<16x512xf32>, i32 -> vector<16x512xf32>
    %c5 = arith.constant 5 : index
    %c0_25 = arith.constant 0 : index
    %c0_26 = arith.constant 0 : index
    %56 = vector.load %arg5[%c5, %c0_25, %c0_26] : memref<9x16x512xf32, #tpu.memory_space<vmem>>, vector<1x16x512xf32>
    %57 = vector.shape_cast %56 : vector<1x16x512xf32> to vector<16x512xf32>
    %58 = arith.mulf %55, %57 : vector<16x512xf32>
    %59 = arith.addf %54, %58 : vector<16x512xf32>
    %c497_i32 = arith.constant 497 : i32
    %60 = tpu.dynamic_rotate %29 by %c497_i32 dim 1 : vector<16x512xf32>, i32 -> vector<16x512xf32>
    %c6 = arith.constant 6 : index
    %c0_27 = arith.constant 0 : index
    %c0_28 = arith.constant 0 : index
    %61 = vector.load %arg5[%c6, %c0_27, %c0_28] : memref<9x16x512xf32, #tpu.memory_space<vmem>>, vector<1x16x512xf32>
    %62 = vector.shape_cast %61 : vector<1x16x512xf32> to vector<16x512xf32>
    %63 = arith.mulf %60, %62 : vector<16x512xf32>
    %64 = arith.addf %59, %63 : vector<16x512xf32>
    %c496_i32 = arith.constant 496 : i32
    %65 = tpu.dynamic_rotate %29 by %c496_i32 dim 1 : vector<16x512xf32>, i32 -> vector<16x512xf32>
    %c7 = arith.constant 7 : index
    %c0_29 = arith.constant 0 : index
    %c0_30 = arith.constant 0 : index
    %66 = vector.load %arg5[%c7, %c0_29, %c0_30] : memref<9x16x512xf32, #tpu.memory_space<vmem>>, vector<1x16x512xf32>
    %67 = vector.shape_cast %66 : vector<1x16x512xf32> to vector<16x512xf32>
    %68 = arith.mulf %65, %67 : vector<16x512xf32>
    %69 = arith.addf %64, %68 : vector<16x512xf32>
    %c495_i32 = arith.constant 495 : i32
    %70 = tpu.dynamic_rotate %29 by %c495_i32 dim 1 : vector<16x512xf32>, i32 -> vector<16x512xf32>
    %c8 = arith.constant 8 : index
    %c0_31 = arith.constant 0 : index
    %c0_32 = arith.constant 0 : index
    %71 = vector.load %arg5[%c8, %c0_31, %c0_32] : memref<9x16x512xf32, #tpu.memory_space<vmem>>, vector<1x16x512xf32>
    %72 = vector.shape_cast %71 : vector<1x16x512xf32> to vector<16x512xf32>
    %73 = arith.mulf %70, %72 : vector<16x512xf32>
    %74 = arith.addf %69, %73 : vector<16x512xf32>
    %c0_33 = arith.constant 0 : index
    %c0_34 = arith.constant 0 : index
    %75 = vector.load %arg6[%c0_33, %c0_34] : memref<16x1xf32, #tpu.memory_space<vmem>>, vector<16x1xf32>
    %c0_35 = arith.constant 0 : index
    %c0_36 = arith.constant 0 : index
    %76 = vector.load %arg7[%c0_35, %c0_36] : memref<16x1xf32, #tpu.memory_space<vmem>>, vector<16x1xf32>
    %cst_37 = arith.constant dense<0.000000e+00> : vector<16xf32>
    %77 = vector.multi_reduction <add>, %74, %cst_37 [1] : vector<16x512xf32> to vector<16xf32>
    %78 = vector.shape_cast %77 : vector<16xf32> to vector<16x1xf32>
    %cst_38 = arith.constant 5.120000e+02 : f32
    %79 = vector.broadcast %cst_38 : f32 to vector<16x1xf32>
    %80 = arith.divf %78, %79 : vector<16x1xf32>
    %81 = vector.broadcast %80 : vector<16x1xf32> to vector<16x512xf32>
    %82 = arith.subf %74, %81 : vector<16x512xf32>
    %83 = arith.mulf %82, %82 : vector<16x512xf32>
    %cst_39 = arith.constant dense<0.000000e+00> : vector<16xf32>
    %84 = vector.multi_reduction <add>, %83, %cst_39 [1] : vector<16x512xf32> to vector<16xf32>
    %85 = vector.shape_cast %84 : vector<16xf32> to vector<16x1xf32>
    %cst_40 = arith.constant 5.120000e+02 : f32
    %86 = vector.broadcast %cst_40 : f32 to vector<16x1xf32>
    %87 = arith.divf %85, %86 : vector<16x1xf32>
    %cst_41 = arith.constant 9.99999974E-6 : f32
    %88 = vector.broadcast %cst_41 : f32 to vector<16x1xf32>
    %89 = arith.addf %87, %88 : vector<16x1xf32>
    %90 = math.rsqrt %89 : vector<16x1xf32>
    %91 = arith.mulf %75, %90 : vector<16x1xf32>
    %92 = vector.broadcast %91 : vector<16x1xf32> to vector<16x512xf32>
    %93 = arith.mulf %82, %92 : vector<16x512xf32>
    %94 = vector.broadcast %76 : vector<16x1xf32> to vector<16x512xf32>
    %95 = arith.addf %93, %94 : vector<16x512xf32>
    %c0_42 = arith.constant 0 : index
    %c0_43 = arith.constant 0 : index
    %96 = vector.load %arg9[%c0_42, %c0_43] : memref<512x2xf32, #tpu.memory_space<vmem>>, vector<512x2xf32>
    %cst_44 = arith.constant dense<0.000000e+00> : vector<16x2xf32>
    %97 = tpu.matmul %95, %96, %cst_44 {dimension_numbers = #tpu.dot_dimension_numbers<[1], [0], [0], [1], [0, 0, 1, 1], [], []>} : vector<16x512xf32>, vector<512x2xf32>, vector<16x2xf32> -> vector<16x2xf32>
    %cst_45 = arith.constant 3.906250e-03 : f32
    %98 = vector.broadcast %cst_45 : f32 to vector<16x2xf32>
    %99 = arith.mulf %97, %98 : vector<16x2xf32>
    %c0_46 = arith.constant 0 : index
    %c0_47 = arith.constant 0 : index
    %100 = vector.load %arg10[%c0_46, %c0_47] : memref<4x16xf32, #tpu.memory_space<vmem>>, vector<4x16xf32>
    %cst_48 = arith.constant dense<0.000000e+00> : vector<4x2xf32>
    %101 = tpu.matmul %100, %99, %cst_48 {dimension_numbers = #tpu.dot_dimension_numbers<[1], [0], [0], [1], [0, 0, 1, 1], [], []>} : vector<4x16xf32>, vector<16x2xf32>, vector<4x2xf32> -> vector<4x2xf32>
    %cst_49 = arith.constant 0.000000e+00 : f32
    %102 = vector.broadcast %cst_49 : f32 to vector<4x2xf32>
    %103 = arith.maximumf %101, %102 : vector<4x2xf32>
    %c0_50 = arith.constant 0 : index
    %c0_51 = arith.constant 0 : index
    %104 = vector.load %arg11[%c0_50, %c0_51] : memref<16x4xf32, #tpu.memory_space<vmem>>, vector<16x4xf32>
    %cst_52 = arith.constant dense<0.000000e+00> : vector<16x2xf32>
    %105 = tpu.matmul %104, %103, %cst_52 {dimension_numbers = #tpu.dot_dimension_numbers<[1], [0], [0], [1], [0, 0, 1, 1], [], []>} : vector<16x4xf32>, vector<4x2xf32>, vector<16x2xf32> -> vector<16x2xf32>
    %106 = arith.negf %105 : vector<16x2xf32>
    %107 = math.exp %106 : vector<16x2xf32>
    %cst_53 = arith.constant 1.000000e+00 : f32
    %108 = vector.broadcast %cst_53 : f32 to vector<16x2xf32>
    %109 = arith.addf %108, %107 : vector<16x2xf32>
    %110 = arith.divf %108, %109 : vector<16x2xf32>
    %c0_54 = arith.constant 0 : index
    %c0_55 = arith.constant 0 : index
    %111 = vector.load %arg8[%c0_54, %c0_55] : memref<2x512xf32, #tpu.memory_space<vmem>>, vector<2x512xf32>
    %cst_56 = arith.constant dense<0.000000e+00> : vector<16x512xf32>
    %112 = tpu.matmul %110, %111, %cst_56 {dimension_numbers = #tpu.dot_dimension_numbers<[1], [0], [0], [1], [0, 0, 1, 1], [], []>} : vector<16x2xf32>, vector<2x512xf32>, vector<16x512xf32> -> vector<16x512xf32>
    %113 = arith.mulf %95, %112 : vector<16x512xf32>
    %114 = arith.negf %113 : vector<16x512xf32>
    %115 = math.exp %114 : vector<16x512xf32>
    %cst_57 = arith.constant 1.000000e+00 : f32
    %116 = vector.broadcast %cst_57 : f32 to vector<16x512xf32>
    %117 = arith.addf %116, %115 : vector<16x512xf32>
    %118 = arith.divf %116, %117 : vector<16x512xf32>
    %119 = arith.mulf %113, %118 : vector<16x512xf32>
    %c0_58 = arith.constant 0 : index
    %c0_59 = arith.constant 0 : index
    %120 = vector.load %arg12[%c0_58, %c0_59] : memref<8x16xf32, #tpu.memory_space<vmem>>, vector<8x16xf32>
    %cst_60 = arith.constant dense<0.000000e+00> : vector<8x512xf32>
    %121 = tpu.matmul %120, %119, %cst_60 {dimension_numbers = #tpu.dot_dimension_numbers<[1], [0], [0], [1], [0, 0, 1, 1], [], []>} : vector<8x16xf32>, vector<16x512xf32>, vector<8x512xf32> -> vector<8x512xf32>
    %c0_61 = arith.constant 0 : index
    %c0_62 = arith.constant 0 : index
    %122 = vector.load %arg13[%c0_61, %c0_62] : memref<8x1xf32, #tpu.memory_space<vmem>>, vector<8x1xf32>
    %c0_63 = arith.constant 0 : index
    %c0_64 = arith.constant 0 : index
    %123 = vector.load %arg14[%c0_63, %c0_64] : memref<8x1xf32, #tpu.memory_space<vmem>>, vector<8x1xf32>
    %cst_65 = arith.constant dense<0.000000e+00> : vector<8xf32>
    %124 = vector.multi_reduction <add>, %121, %cst_65 [1] : vector<8x512xf32> to vector<8xf32>
    %125 = vector.shape_cast %124 : vector<8xf32> to vector<8x1xf32>
    %cst_66 = arith.constant 5.120000e+02 : f32
    %126 = vector.broadcast %cst_66 : f32 to vector<8x1xf32>
    %127 = arith.divf %125, %126 : vector<8x1xf32>
    %128 = vector.broadcast %127 : vector<8x1xf32> to vector<8x512xf32>
    %129 = arith.subf %121, %128 : vector<8x512xf32>
    %130 = arith.mulf %129, %129 : vector<8x512xf32>
    %cst_67 = arith.constant dense<0.000000e+00> : vector<8xf32>
    %131 = vector.multi_reduction <add>, %130, %cst_67 [1] : vector<8x512xf32> to vector<8xf32>
    %132 = vector.shape_cast %131 : vector<8xf32> to vector<8x1xf32>
    %cst_68 = arith.constant 5.120000e+02 : f32
    %133 = vector.broadcast %cst_68 : f32 to vector<8x1xf32>
    %134 = arith.divf %132, %133 : vector<8x1xf32>
    %cst_69 = arith.constant 9.99999974E-6 : f32
    %135 = vector.broadcast %cst_69 : f32 to vector<8x1xf32>
    %136 = arith.addf %134, %135 : vector<8x1xf32>
    %137 = math.rsqrt %136 : vector<8x1xf32>
    %138 = arith.mulf %122, %137 : vector<8x1xf32>
    %139 = vector.broadcast %138 : vector<8x1xf32> to vector<8x512xf32>
    %140 = arith.mulf %129, %139 : vector<8x512xf32>
    %141 = vector.broadcast %123 : vector<8x1xf32> to vector<8x512xf32>
    %142 = arith.addf %140, %141 : vector<8x512xf32>
    %143 = arith.addf %142, %0 : vector<8x512xf32>
    %c0_70 = arith.constant 0 : index
    %c0_71 = arith.constant 0 : index
    %144 = vector.load %arg15[%c0_70, %c0_71] : memref<8x512xf32, #tpu.memory_space<vmem>>, vector<8x512xf32>
    tpu.vector_store %arg15[%c0_70, %c0_71], %143 {strides = array<i32>} : memref<8x512xf32, #tpu.memory_space<vmem>>, vector<8x512xf32>,
    return
  }
  func.func @transform_0(%arg0: i32) -> (i32, i32) {
    %c0_i32 = arith.constant 0 : i32
    %c0_i32_0 = arith.constant 0 : i32
    %c0_i32_1 = arith.constant 0 : i32
    return %c0_i32, %c0_i32_0 : i32, i32
  }
  func.func @transform_1(%arg0: i32) -> (i32, i32) {
    %c0_i32 = arith.constant 0 : i32
    %c0_i32_0 = arith.constant 0 : i32
    %c0_i32_1 = arith.constant 0 : i32
    return %c0_i32, %c0_i32_0 : i32, i32
  }
  func.func @transform_2(%arg0: i32) -> (i32, i32) {
    %c0_i32 = arith.constant 0 : i32
    %c0_i32_0 = arith.constant 0 : i32
    %c0_i32_1 = arith.constant 0 : i32
    return %c0_i32, %c0_i32_0 : i32, i32
  }
  func.func @transform_3(%arg0: i32) -> (i32, i32) {
    %c0_i32 = arith.constant 0 : i32
    %c0_i32_0 = arith.constant 0 : i32
    %c0_i32_1 = arith.constant 0 : i32
    return %c0_i32, %c0_i32_0 : i32, i32
  }
  func.func @transform_4(%arg0: i32) -> (i32, i32, i32) {
    %c0_i32 = arith.constant 0 : i32
    %c0_i32_0 = arith.constant 0 : i32
    %c0_i32_1 = arith.constant 0 : i32
    %c0_i32_2 = arith.constant 0 : i32
    return %c0_i32, %c0_i32_0, %c0_i32_1 : i32, i32, i32
  }
  func.func @transform_5(%arg0: i32) -> (i32, i32) {
    %c0_i32 = arith.constant 0 : i32
    %c0_i32_0 = arith.constant 0 : i32
    %c0_i32_1 = arith.constant 0 : i32
    return %c0_i32, %c0_i32_0 : i32, i32
  }
  func.func @transform_6(%arg0: i32) -> (i32, i32) {
    %c0_i32 = arith.constant 0 : i32
    %c0_i32_0 = arith.constant 0 : i32
    %c0_i32_1 = arith.constant 0 : i32
    return %c0_i32, %c0_i32_0 : i32, i32
  }
  func.func @transform_7(%arg0: i32) -> (i32, i32) {
    %c0_i32 = arith.constant 0 : i32
    %c0_i32_0 = arith.constant 0 : i32
    %c0_i32_1 = arith.constant 0 : i32
    return %c0_i32, %c0_i32_0 : i32, i32
  }
  func.func @transform_8(%arg0: i32) -> (i32, i32) {
    %c0_i32 = arith.constant 0 : i32
    %c0_i32_0 = arith.constant 0 : i32
    %c0_i32_1 = arith.constant 0 : i32
    return %c0_i32, %c0_i32_0 : i32, i32
  }
  func.func @transform_9(%arg0: i32) -> (i32, i32) {
    %c0_i32 = arith.constant 0 : i32
    %c0_i32_0 = arith.constant 0 : i32
    %c0_i32_1 = arith.constant 0 : i32
    return %c0_i32, %c0_i32_0 : i32, i32
  }
  func.func @transform_10(%arg0: i32) -> (i32, i32) {
    %c0_i32 = arith.constant 0 : i32
    %c0_i32_0 = arith.constant 0 : i32
    %c0_i32_1 = arith.constant 0 : i32
    return %c0_i32, %c0_i32_0 : i32, i32
  }
  func.func @transform_11(%arg0: i32) -> (i32, i32) {
    %c0_i32 = arith.constant 0 : i32
    %c0_i32_0 = arith.constant 0 : i32
    %c0_i32_1 = arith.constant 0 : i32
    return %c0_i32, %c0_i32_0 : i32, i32
  }
  func.func @transform_12(%arg0: i32) -> (i32, i32) {
    %c0_i32 = arith.constant 0 : i32
    %c0_i32_0 = arith.constant 0 : i32
    %c0_i32_1 = arith.constant 0 : i32
    return %c0_i32, %c0_i32_0 : i32, i32
  }
  func.func @transform_13(%arg0: i32) -> (i32, i32) {
    %c0_i32 = arith.constant 0 : i32
    %c0_i32_0 = arith.constant 0 : i32
    %c0_i32_1 = arith.constant 0 : i32
    return %c0_i32, %c0_i32_0 : i32, i32
  }
  func.func @transform_14(%arg0: i32) -> (i32, i32) {
    %c0_i32 = arith.constant 0 : i32
    %c0_i32_0 = arith.constant 0 : i32
    %c0_i32_1 = arith.constant 0 : i32
    return %c0_i32, %c0_i32_0 : i32, i32
  }
}

</mosaic_0001>

<llo_original>
// kernel: mobile_bottleneck.2
$region0: #{mobile_bottleneck.2}
  #allocation0 [shape = 'u32[]', space=smem, size = 0x4, offset = 0x4, fixed_abs, tag = 'smem constant byte address 0x4 - core index']
  #allocation1 [shape = 'u32[144,128]{1,0:T(1,128)}', space=vmem, size = 0x12000, scoped, tag = 'internal scratch']
  %s0 = inlined_call_operand.vmem [shape: f32[8,512], index: 0, kind: input, shape index: {}]
  %s1 = inlined_call_operand.vmem [shape: f32[16,8], index: 1, kind: input, shape index: {}]
  %s2 = inlined_call_operand.vmem [shape: f32[16,1], index: 2, kind: input, shape index: {}]
  %s3 = inlined_call_operand.vmem [shape: f32[16,1], index: 3, kind: input, shape index: {}]
  %s4 = inlined_call_operand.vmem [shape: f32[9,16,512], index: 4, kind: input, shape index: {}]
  %s5 = inlined_call_operand.vmem [shape: f32[16,1], index: 5, kind: input, shape index: {}]
  %s6 = inlined_call_operand.vmem [shape: f32[16,1], index: 6, kind: input, shape index: {}]
  %s7 = inlined_call_operand.vmem [shape: f32[2,512], index: 7, kind: input, shape index: {}]
  %s8 = inlined_call_operand.vmem [shape: f32[512,2], index: 8, kind: input, shape index: {}]
  %s9 = inlined_call_operand.vmem [shape: f32[4,16], index: 9, kind: input, shape index: {}]
  %s10 = inlined_call_operand.vmem [shape: f32[16,4], index: 10, kind: input, shape index: {}]
  %s11 = inlined_call_operand.vmem [shape: f32[8,16], index: 11, kind: input, shape index: {}]
  %s12 = inlined_call_operand.vmem [shape: f32[8,1], index: 12, kind: input, shape index: {}]
  %s13 = inlined_call_operand.vmem [shape: f32[8,1], index: 13, kind: input, shape index: {}]
  %s14 = inlined_call_operand.vmem [shape: f32[8,512], index: 14, kind: output, shape index: {}]
  %s15 = sld [smem:[#allocation0]]
  $region66: #{mobile_bottleneck.2} parent=0
    _
  %s17 = ssub.s32 1, %s15
  %s18 = scalar_select 0, %s17, %s15
  // Predicated region
  $region2: #{mobile_bottleneck.2} parent=0 // pred_check
    _
  $region3: #{mobile_bottleneck.2} parent=0 // pred_check_branch
    %20 = sbr.rel (0) target = $region5
  $region4: #{mobile_bottleneck.2} parent=0 // pred_region
    _
  $region5: #{mobile_bottleneck.2} parent=0 // pred_fallthru
    _
  // Predicated region
  $region6: #{mobile_bottleneck.2} parent=0 // pred_check
    _
  $region7: #{mobile_bottleneck.2} parent=0 // pred_check_branch
    %22 = sbr.rel (0) target = $region9
  $region8: #{mobile_bottleneck.2} parent=0 // pred_region
    _
  $region9: #{mobile_bottleneck.2} parent=0 // pred_fallthru
    _
  // Predicated region
  $region10: #{mobile_bottleneck.2} parent=0 // pred_check
    _
  $region11: #{mobile_bottleneck.2} parent=0 // pred_check_branch
    %24 = sbr.rel (0) target = $region13
  $region12: #{mobile_bottleneck.2} parent=0 // pred_region
    _
  $region13: #{mobile_bottleneck.2} parent=0 // pred_fallthru
    _
  // Predicated region
  $region14: #{mobile_bottleneck.2} parent=0 // pred_check
    _
  $region15: #{mobile_bottleneck.2} parent=0 // pred_check_branch
    %26 = sbr.rel (0) target = $region17
  $region16: #{mobile_bottleneck.2} parent=0 // pred_region
    _
  $region17: #{mobile_bottleneck.2} parent=0 // pred_fallthru
    _
  // Predicated region
  $region18: #{mobile_bottleneck.2} parent=0 // pred_check
    _
  $region19: #{mobile_bottleneck.2} parent=0 // pred_check_branch
    %28 = sbr.rel (0) target = $region21
  $region20: #{mobile_bottleneck.2} parent=0 // pred_region
    _
  $region21: #{mobile_bottleneck.2} parent=0 // pred_fallthru
    _
  // Predicated region
  $region22: #{mobile_bottleneck.2} parent=0 // pred_check
    _
  $region23: #{mobile_bottleneck.2} parent=0 // pred_check_branch
    %30 = sbr.rel (0) target = $region25
  $region24: #{mobile_bottleneck.2} parent=0 // pred_region
    _
  $region25: #{mobile_bottleneck.2} parent=0 // pred_fallthru
    _
  // Predicated region
  $region26: #{mobile_bottleneck.2} parent=0 // pred_check
    _
  $region27: #{mobile_bottleneck.2} parent=0 // pred_check_branch
    %32 = sbr.rel (0) target = $region29
  $region28: #{mobile_bottleneck.2} parent=0 // pred_region
    _
  $region29: #{mobile_bottleneck.2} parent=0 // pred_fallthru
    _
  // Predicated region
  $region30: #{mobile_bottleneck.2} parent=0 // pred_check
    _
  $region31: #{mobile_bottleneck.2} parent=0 // pred_check_branch
    %34 = sbr.rel (0) target = $region33
  $region32: #{mobile_bottleneck.2} parent=0 // pred_region
    _
  $region33: #{mobile_bottleneck.2} parent=0 // pred_fallthru
    _
  // Predicated region
  $region34: #{mobile_bottleneck.2} parent=0 // pred_check
    _
  $region35: #{mobile_bottleneck.2} parent=0 // pred_check_branch
    %36 = sbr.rel (0) target = $region37
  $region36: #{mobile_bottleneck.2} parent=0 // pred_region
    _
  $region37: #{mobile_bottleneck.2} parent=0 // pred_fallthru
    _
  // Predicated region
  $region38: #{mobile_bottleneck.2} parent=0 // pred_check
    _
  $region39: #{mobile_bottleneck.2} parent=0 // pred_check_branch
    %38 = sbr.rel (0) target = $region41
  $region40: #{mobile_bottleneck.2} parent=0 // pred_region
    _
  $region41: #{mobile_bottleneck.2} parent=0 // pred_fallthru
    _
  // Predicated region
  $region42: #{mobile_bottleneck.2} parent=0 // pred_check
    _
  $region43: #{mobile_bottleneck.2} parent=0 // pred_check_branch
    %40 = sbr.rel (0) target = $region45
  $region44: #{mobile_bottleneck.2} parent=0 // pred_region
    _
  $region45: #{mobile_bottleneck.2} parent=0 // pred_fallthru
    _
  // Predicated region
  $region46: #{mobile_bottleneck.2} parent=0 // pred_check
    _
  $region47: #{mobile_bottleneck.2} parent=0 // pred_check_branch
    %42 = sbr.rel (0) target = $region49
  $region48: #{mobile_bottleneck.2} parent=0 // pred_region
    _
  $region49: #{mobile_bottleneck.2} parent=0 // pred_fallthru
    _
  // Predicated region
  $region50: #{mobile_bottleneck.2} parent=0 // pred_check
    _
  $region51: #{mobile_bottleneck.2} parent=0 // pred_check_branch
    %44 = sbr.rel (0) target = $region53
  $region52: #{mobile_bottleneck.2} parent=0 // pred_region
    _
  $region53: #{mobile_bottleneck.2} parent=0 // pred_fallthru
    _
  // Predicated region
  $region54: #{mobile_bottleneck.2} parent=0 // pred_check
    _
  $region55: #{mobile_bottleneck.2} parent=0 // pred_check_branch
    %46 = sbr.rel (0) target = $region57
  $region56: #{mobile_bottleneck.2} parent=0 // pred_region
    _
  $region57: #{mobile_bottleneck.2} parent=0 // pred_fallthru
    _
  %v47 = vld [vmem:[%s0] sm:$0xff]
  %v48 = vld [vmem:[%s0 + $0x8] sm:$0xff]
  %v49 = vld [vmem:[%s0 + $0x10] sm:$0xff]
  %v50 = vld [vmem:[%s0 + $0x18] sm:$0xff]
  %v51 = vld [vmem:[%s1] sm:$0xff]
  %v52 = vld [vmem:[%s1 + $0x8] sm:$0xff]
  %vm53 = vcmask 64512
  %v55 = vsel %vm53, %v51, 0
  %v58 = vsel %vm53, %v52, 0
  %60 = vmatprep.subr.mxu0 %v48
  %61 = vmatpush1.msra.mxu0 %v47
  %62 = vmatprep.subr.mxu0 0.0
  %63 = vmatpush1.msra.mxu0 0.0
  %64 = vmatprep.subr.mxu0 0.0
  %65 = vmatpush1.msra.mxu0 0.0
  %66 = vmatprep.subr.mxu0 0.0
  %67 = vmatpush1.msra.mxu0 0.0
  %68 = vmatprep.subr.mxu0 0.0
  %69 = vmatpush1.msra.mxu0 0.0
  %70 = vmatprep.subr.mxu0 0.0
  %71 = vmatpush1.msra.mxu0 0.0
  %72 = vmatprep.subr.mxu0 0.0
  %73 = vmatpush1.msra.mxu0 0.0
  %74 = vmatprep.subr.mxu0 0.0
  %75 = vmatpush1.msra.mxu0 0.0
  %76 = vmatprep.subr.mxu0 0.0
  %77 = vmatpush1.msra.mxu0 0.0
  %78 = vmatprep.subr.mxu0 0.0
  %79 = vmatpush1.msra.mxu0 0.0
  %80 = vmatprep.subr.mxu0 0.0
  %81 = vmatpush1.msra.mxu0 0.0
  %82 = vmatprep.subr.mxu0 0.0
  %83 = vmatpush1.msra.mxu0 0.0
  %84 = vmatprep.subr.mxu0 0.0
  %85 = vmatpush1.msra.mxu0 0.0
  %86 = vmatprep.subr.mxu0 0.0
  %87 = vmatpush1.msra.mxu0 0.0
  %88 = vmatprep.subr.mxu0 0.0
  %89 = vmatpush1.msra.mxu0 0.0
  %90 = vmatprep.subr.mxu0 0.0
  %91 = vmatpush1.msra.mxu0 0.0
  %92 = vmatprep.subr.mxu0 0.0
  %93 = vmatpush1.msra.mxu0 0.0
  %94 = vmatprep.subr.mxu0 0.0
  %95 = vmatpush1.msra.mxu0 0.0
  %96 = vmatprep.subr.mxu0 0.0
  %97 = vmatpush1.msra.mxu0 0.0
  %98 = vmatprep.subr.mxu0 0.0
  %99 = vmatpush1.msra.mxu0 0.0
  %100 = vmatprep.subr.mxu0 0.0
  %101 = vmatpush1.msra.mxu0 0.0
  %102 = vmatprep.subr.mxu0 0.0
  %103 = vmatpush1.msra.mxu0 0.0
  %104 = vmatprep.subr.mxu0 0.0
  %105 = vmatpush1.msra.mxu0 0.0
  %106 = vmatprep.subr.mxu0 0.0
  %107 = vmatpush1.msra.mxu0 0.0
  %108 = vmatprep.subr.mxu0 0.0
  %109 = vmatpush1.msra.mxu0 0.0
  %110 = vmatprep.subr.mxu0 0.0
  %111 = vmatpush1.msra.mxu0 0.0
  %112 = vmatprep.subr.mxu0 0.0
  %113 = vmatpush1.msra.mxu0 0.0
  %114 = vmatprep.subr.mxu0 0.0
  %115 = vmatpush1.msra.mxu0 0.0
  %116 = vmatprep.subr.mxu0 0.0
  %117 = vmatpush1.msra.mxu0 0.0
  %118 = vmatprep.subr.mxu0 0.0
  %119 = vmatpush1.msra.mxu0 0.0
  %120 = vmatprep.subr.mxu0 0.0
  %121 = vmatpush1.msra.mxu0 0.0
  %122 = vmatprep.subr.mxu0 0.0
  %123 = vmatpush1.msra.mxu0 0.0
  %124 = vmatprep.mubr.f32.mxu0 0.0
  %125 = vmatmul.mubr.f32.gmra.mrb[0].mxu0 %v55
  %v126 = vpop.f32.mrb[0].mxu0
  %v127 = vadd.f32 0.0, %v126
  %v128 = vpop.f32.mrb[0].mxu0
  %v129 = vadd.f32 0.0, %v128
  %130 = vmatprep.mubr.f32.mxu0 0.0
  %131 = vmatmul.mubr.f32.gmra.mrb[0].mxu0 %v58
  %v132 = vpop.f32.mrb[0].mxu0
  %v133 = vadd.f32 0.0, %v132
  %v134 = vpop.f32.mrb[0].mxu0
  %v135 = vadd.f32 0.0, %v134
  %136 = vdwg.mxu0
  %137 = vmatprep.subr.mxu0 %v50
  %138 = vmatpush1.msra.mxu0 %v49
  %139 = vmatprep.subr.mxu0 0.0
  %140 = vmatpush1.msra.mxu0 0.0
  %141 = vmatprep.subr.mxu0 0.0
  %142 = vmatpush1.msra.mxu0 0.0
  %143 = vmatprep.subr.mxu0 0.0
  %144 = vmatpush1.msra.mxu0 0.0
  %145 = vmatprep.subr.mxu0 0.0
  %146 = vmatpush1.msra.mxu0 0.0
  %147 = vmatprep.subr.mxu0 0.0
  %148 = vmatpush1.msra.mxu0 0.0
  %149 = vmatprep.subr.mxu0 0.0
  %150 = vmatpush1.msra.mxu0 0.0
  %151 = vmatprep.subr.mxu0 0.0
  %152 = vmatpush1.msra.mxu0 0.0
  %153 = vmatprep.subr.mxu0 0.0
  %154 = vmatpush1.msra.mxu0 0.0
  %155 = vmatprep.subr.mxu0 0.0
  %156 = vmatpush1.msra.mxu0 0.0
  %157 = vmatprep.subr.mxu0 0.0
  %158 = vmatpush1.msra.mxu0 0.0
  %159 = vmatprep.subr.mxu0 0.0
  %160 = vmatpush1.msra.mxu0 0.0
  %161 = vmatprep.subr.mxu0 0.0
  %162 = vmatpush1.msra.mxu0 0.0
  %163 = vmatprep.subr.mxu0 0.0
  %164 = vmatpush1.msra.mxu0 0.0
  %165 = vmatprep.subr.mxu0 0.0
  %166 = vmatpush1.msra.mxu0 0.0
  %167 = vmatprep.subr.mxu0 0.0
  %168 = vmatpush1.msra.mxu0 0.0
  %169 = vmatprep.subr.mxu0 0.0
  %170 = vmatpush1.msra.mxu0 0.0
  %171 = vmatprep.subr.mxu0 0.0
  %172 = vmatpush1.msra.mxu0 0.0
  %173 = vmatprep.subr.mxu0 0.0
  %174 = vmatpush1.msra.mxu0 0.0
  %175 = vmatprep.subr.mxu0 0.0
  %176 = vmatpush1.msra.mxu0 0.0
  %177 = vmatprep.subr.mxu0 0.0
  %178 = vmatpush1.msra.mxu0 0.0
  %179 = vmatprep.subr.mxu0 0.0
  %180 = vmatpush1.msra.mxu0 0.0
  %181 = vmatprep.subr.mxu0 0.0
  %182 = vmatpush1.msra.mxu0 0.0
  %183 = vmatprep.subr.mxu0 0.0
  %184 = vmatpush1.msra.mxu0 0.0
  %185 = vmatprep.subr.mxu0 0.0
  %186 = vmatpush1.msra.mxu0 0.0
  %187 = vmatprep.subr.mxu0 0.0
  %188 = vmatpush1.msra.mxu0 0.0
  %189 = vmatprep.subr.mxu0 0.0
  %190 = vmatpush1.msra.mxu0 0.0
  %191 = vmatprep.subr.mxu0 0.0
  %192 = vmatpush1.msra.mxu0 0.0
  %193 = vmatprep.subr.mxu0 0.0
  %194 = vmatpush1.msra.mxu0 0.0
  %195 = vmatprep.subr.mxu0 0.0
  %196 = vmatpush1.msra.mxu0 0.0
  %197 = vmatprep.subr.mxu0 0.0
  %198 = vmatpush1.msra.mxu0 0.0
  %199 = vmatprep.subr.mxu0 0.0
  %200 = vmatpush1.msra.mxu0 0.0
  %201 = vmatprep.mubr.f32.mxu0 0.0
  %202 = vmatmul.mubr.f32.gmra.mrb[0].mxu0 %v55
  %v203 = vpop.f32.mrb[0].mxu0
  %v204 = vadd.f32 0.0, %v203
  %v205 = vpop.f32.mrb[0].mxu0
  %v206 = vadd.f32 0.0, %v205
  %207 = vmatprep.mubr.f32.mxu0 0.0
  %208 = vmatmul.mubr.f32.gmra.mrb[0].mxu0 %v58
  %v209 = vpop.f32.mrb[0].mxu0
  %v210 = vadd.f32 0.0, %v209
  %v211 = vpop.f32.mrb[0].mxu0
  %v212 = vadd.f32 0.0, %v211
  %213 = vdwg.mxu0
  %v214 = vld [vmem:[%s2] sm:$0xff]
  %v215 = vld [vmem:[%s2 + $0x8] sm:$0xff]
  %v216 = vld [vmem:[%s3] sm:$0xff]
  %v217 = vld [vmem:[%s3 + $0x8] sm:$0xff]
  %v218 = vadd.f32 %v127, %v129
  %v219 = vadd.f32 %v218, %v204
  %v220 = vadd.f32 %v219, %v206
  %221 = vadd.xlane.f32.xlu0 %v220
  %v222 = vpop.xlane.xlu0 %221
  %v223 = vadd.f32 %v133, %v135
  %v224 = vadd.f32 %v223, %v210
  %v225 = vadd.f32 %v224, %v212
  %226 = vadd.xlane.f32.xlu0 %v225
  %v227 = vpop.xlane.xlu0 %226
  %v228 = vrcp.pop 512.0
  %v229 = vmul.f32 %v222, %v228
  %v230 = vmul.f32 %v227, %v228
  %v231 = vsub.f32 %v127, %v229
  %v232 = vsub.f32 %v129, %v229
  %v233 = vsub.f32 %v204, %v229
  %v234 = vsub.f32 %v206, %v229
  %v235 = vsub.f32 %v133, %v230
  %v236 = vsub.f32 %v135, %v230
  %v237 = vsub.f32 %v210, %v230
  %v238 = vsub.f32 %v212, %v230
  %v239 = vmul.f32 %v231, %v231
  %v240 = vmul.f32 %v232, %v232
  %v241 = vmul.f32 %v233, %v233
  %v242 = vmul.f32 %v234, %v234
  %v243 = vmul.f32 %v235, %v235
  %v244 = vmul.f32 %v236, %v236
  %v245 = vmul.f32 %v237, %v237
  %v246 = vmul.f32 %v238, %v238
  %v247 = vadd.f32 %v239, %v240
  %v248 = vadd.f32 %v247, %v241
  %v249 = vadd.f32 %v248, %v242
  %250 = vadd.xlane.f32.xlu0 %v249
  %v251 = vpop.xlane.xlu0 %250
  %v252 = vadd.f32 %v243, %v244
  %v253 = vadd.f32 %v252, %v245
  %v254 = vadd.f32 %v253, %v246
  %255 = vadd.xlane.f32.xlu0 %v254
  %v256 = vpop.xlane.xlu0 %255
  %v257 = vmul.f32 %v251, %v228
  %v258 = vmul.f32 %v256, %v228
  %v259 = vadd.f32 %v257, 1e-05
  %v260 = vadd.f32 %v258, 1e-05
  %v261 = vrsqrt.pop %v259
  %v262 = vrsqrt.pop %v260
  %v263 = vmul.f32 %v214, %v261
  %v264 = vmul.f32 %v215, %v262
  %266 = vset.pattern.permute.xlu0 0
  %267 = vperm.xlu0 %266, %v263
  %v268 = vpop.permute.xlu0 %267
  %271 = vset.pattern.permute.xlu0 0
  %272 = vperm.xlu0 %271, %v264
  %v273 = vpop.permute.xlu0 %272
  %v275 = vmul.f32 %v231, %v268
  %v276 = vmul.f32 %v232, %v268
  %v277 = vmul.f32 %v233, %v268
  %v278 = vmul.f32 %v234, %v268
  %v279 = vmul.f32 %v235, %v273
  %v280 = vmul.f32 %v236, %v273
  %v281 = vmul.f32 %v237, %v273
  %v282 = vmul.f32 %v238, %v273
  %284 = vset.pattern.permute.xlu0 0
  %285 = vperm.xlu0 %284, %v216
  %v286 = vpop.permute.xlu0 %285
  %289 = vset.pattern.permute.xlu0 0
  %290 = vperm.xlu0 %289, %v217
  %v291 = vpop.permute.xlu0 %290
  %v293 = vadd.f32 %v275, %v286
  %v294 = vadd.f32 %v276, %v286
  %v295 = vadd.f32 %v277, %v286
  %v296 = vadd.f32 %v278, %v286
  %v297 = vadd.f32 %v279, %v291
  %v298 = vadd.f32 %v280, %v291
  %v299 = vadd.f32 %v281, %v291
  %v300 = vadd.f32 %v282, %v291
  %v301 = vxor.u32 %v293, 2147483648
  %v302 = vxor.u32 %v294, 2147483648
  %v303 = vxor.u32 %v295, 2147483648
  %v304 = vxor.u32 %v296, 2147483648
  %v305 = vxor.u32 %v297, 2147483648
  %v306 = vxor.u32 %v298, 2147483648
  %v307 = vxor.u32 %v299, 2147483648
  %v308 = vxor.u32 %v300, 2147483648
  %v309 = vmul.f32 %v301, 1.442695
  %v310 = vpow.pop %v309
  %v311 = vmul.f32 %v302, 1.442695
  %v312 = vpow.pop %v311
  %v313 = vmul.f32 %v303, 1.442695
  %v314 = vpow.pop %v313
  %v315 = vmul.f32 %v304, 1.442695
  %v316 = vpow.pop %v315
  %v317 = vmul.f32 %v305, 1.442695
  %v318 = vpow.pop %v317
  %v319 = vmul.f32 %v306, 1.442695
  %v320 = vpow.pop %v319
  %v321 = vmul.f32 %v307, 1.442695
  %v322 = vpow.pop %v321
  %v323 = vmul.f32 %v308, 1.442695
  %v324 = vpow.pop %v323
  %v325 = vadd.f32 %v310, 1.0
  %v326 = vadd.f32 %v312, 1.0
  %v327 = vadd.f32 %v314, 1.0
  %v328 = vadd.f32 %v316, 1.0
  %v329 = vadd.f32 %v318, 1.0
  %v330 = vadd.f32 %v320, 1.0
  %v331 = vadd.f32 %v322, 1.0
  %v332 = vadd.f32 %v324, 1.0
  %v333 = vrcp.pop %v325
  %v334 = vmul.f32 1.0, %v333
  %v335 = vrcp.pop %v326
  %v336 = vmul.f32 1.0, %v335
  %v337 = vrcp.pop %v327
  %v338 = vmul.f32 1.0, %v337
  %v339 = vrcp.pop %v328
  %v340 = vmul.f32 1.0, %v339
  %v341 = vrcp.pop %v329
  %v342 = vmul.f32 1.0, %v341
  %v343 = vrcp.pop %v330
  %v344 = vmul.f32 1.0, %v343
  %v345 = vrcp.pop %v331
  %v346 = vmul.f32 1.0, %v345
  %v347 = vrcp.pop %v332
  %v348 = vmul.f32 1.0, %v347
  %v349 = vmul.f32 %v293, %v334
  %v350 = vmul.f32 %v294, %v336
  %v351 = vmul.f32 %v295, %v338
  %v352 = vmul.f32 %v296, %v340
  %v353 = vmul.f32 %v297, %v342
  %v354 = vmul.f32 %v298, %v344
  %v355 = vmul.f32 %v299, %v346
  %v356 = vmul.f32 %v300, %v348
  %357 = vrot.lane.b32.xlu0 %v349, 17
  %v358 = vpop.permute.xlu0 %357
  %359 = vrot.lane.b32.xlu0 %v353, 17
  %v360 = vpop.permute.xlu0 %359
  %361 = vrot.lane.b32.xlu0 %v350, 17
  %v362 = vpop.permute.xlu0 %361
  %363 = vrot.lane.b32.xlu0 %v354, 17
  %v364 = vpop.permute.xlu0 %363
  %365 = vrot.lane.b32.xlu0 %v351, 17
  %v366 = vpop.permute.xlu0 %365
  %367 = vrot.lane.b32.xlu0 %v355, 17
  %v368 = vpop.permute.xlu0 %367
  %369 = vrot.lane.b32.xlu0 %v352, 17
  %v370 = vpop.permute.xlu0 %369
  %371 = vrot.lane.b32.xlu0 %v356, 17
  %v372 = vpop.permute.xlu0 %371
  %v373 = vlaneseq
  %v374 = vand.u32 %v373, 127
  %vm375 = vcmp.lt.s32.totalorder %v374, 17
  %v376 = vsel %vm375, %v366, %v370
  %v377 = vsel %vm375, %v368, %v372
  %v378 = vsel %vm375, %v362, %v366
  %v379 = vsel %vm375, %v364, %v368
  %v380 = vsel %vm375, %v358, %v362
  %v381 = vsel %vm375, %v360, %v364
  %v382 = vsel %vm375, %v370, %v358
  %v383 = vsel %vm375, %v372, %v360
  %v384 = vld [vmem:[%s4] sm:$0xff]
  %v385 = vld [vmem:[%s4 + $0x8] sm:$0xff]
  %v386 = vld [vmem:[%s4 + $0x10] sm:$0xff]
  %v387 = vld [vmem:[%s4 + $0x18] sm:$0xff]
  %v388 = vld [vmem:[%s4 + $0x20] sm:$0xff]
  %v389 = vld [vmem:[%s4 + $0x28] sm:$0xff]
  %v390 = vld [vmem:[%s4 + $0x30] sm:$0xff]
  %v391 = vld [vmem:[%s4 + $0x38] sm:$0xff]
  %v392 = vmul.f32 %v382, %v384
  %v393 = vmul.f32 %v380, %v385
  %v394 = vmul.f32 %v378, %v386
  %v395 = vmul.f32 %v376, %v387
  %v396 = vmul.f32 %v383, %v388
  %v397 = vmul.f32 %v381, %v389
  %v398 = vmul.f32 %v379, %v390
  %v399 = vmul.f32 %v377, %v391
  %v400 = vadd.f32 %v392, 0.0
  %v401 = vadd.f32 %v393, 0.0
  %v402 = vadd.f32 %v394, 0.0
  %v403 = vadd.f32 %v395, 0.0
  %v404 = vadd.f32 %v396, 0.0
  %v405 = vadd.f32 %v397, 0.0
  %v406 = vadd.f32 %v398, 0.0
  %v407 = vadd.f32 %v399, 0.0
  %408 = vrot.lane.b32.xlu0 %v349, 16
  %v409 = vpop.permute.xlu0 %408
  %410 = vrot.lane.b32.xlu0 %v353, 16
  %v411 = vpop.permute.xlu0 %410
  %412 = vrot.lane.b32.xlu0 %v350, 16
  %v413 = vpop.permute.xlu0 %412
  %414 = vrot.lane.b32.xlu0 %v354, 16
  %v415 = vpop.permute.xlu0 %414
  %416 = vrot.lane.b32.xlu0 %v351, 16
  %v417 = vpop.permute.xlu0 %416
  %418 = vrot.lane.b32.xlu0 %v355, 16
  %v419 = vpop.permute.xlu0 %418
  %420 = vrot.lane.b32.xlu0 %v352, 16
  %v421 = vpop.permute.xlu0 %420
  %422 = vrot.lane.b32.xlu0 %v356, 16
  %v423 = vpop.permute.xlu0 %422
  %vm424 = vcmp.lt.s32.totalorder %v374, 16
  %v425 = vsel %vm424, %v417, %v421
  %v426 = vsel %vm424, %v419, %v423
  %v427 = vsel %vm424, %v413, %v417
  %v428 = vsel %vm424, %v415, %v419
  %v429 = vsel %vm424, %v409, %v413
  %v430 = vsel %vm424, %v411, %v415
  %v431 = vsel %vm424, %v421, %v409
  %v432 = vsel %vm424, %v423, %v411
  %s433 = scalar_lea.vmem %s4, 64
  %v434 = vld [vmem:[%s433] sm:$0xff]
  %v435 = vld [vmem:[%s433 + $0x8] sm:$0xff]
  %v436 = vld [vmem:[%s433 + $0x10] sm:$0xff]
  %v437 = vld [vmem:[%s433 + $0x18] sm:$0xff]
  %v438 = vld [vmem:[%s433 + $0x20] sm:$0xff]
  %v439 = vld [vmem:[%s433 + $0x28] sm:$0xff]
  %v440 = vld [vmem:[%s433 + $0x30] sm:$0xff]
  %v441 = vld [vmem:[%s433 + $0x38] sm:$0xff]
  %v442 = vmul.f32 %v431, %v434
  %v443 = vmul.f32 %v429, %v435
  %v444 = vmul.f32 %v427, %v436
  %v445 = vmul.f32 %v425, %v437
  %v446 = vmul.f32 %v432, %v438
  %v447 = vmul.f32 %v430, %v439
  %v448 = vmul.f32 %v428, %v440
  %v449 = vmul.f32 %v426, %v441
  %v450 = vadd.f32 %v400, %v442
  %v451 = vadd.f32 %v401, %v443
  %v452 = vadd.f32 %v402, %v444
  %v453 = vadd.f32 %v403, %v445
  %v454 = vadd.f32 %v404, %v446
  %v455 = vadd.f32 %v405, %v447
  %v456 = vadd.f32 %v406, %v448
  %v457 = vadd.f32 %v407, %v449
  %458 = vrot.lane.b32.xlu0 %v349, 15
  %v459 = vpop.permute.xlu0 %458
  %460 = vrot.lane.b32.xlu0 %v353, 15
  %v461 = vpop.permute.xlu0 %460
  %462 = vrot.lane.b32.xlu0 %v350, 15
  %v463 = vpop.permute.xlu0 %462
  %464 = vrot.lane.b32.xlu0 %v354, 15
  %v465 = vpop.permute.xlu0 %464
  %466 = vrot.lane.b32.xlu0 %v351, 15
  %v467 = vpop.permute.xlu0 %466
  %468 = vrot.lane.b32.xlu0 %v355, 15
  %v469 = vpop.permute.xlu0 %468
  %470 = vrot.lane.b32.xlu0 %v352, 15
  %v471 = vpop.permute.xlu0 %470
  %472 = vrot.lane.b32.xlu0 %v356, 15
  %v473 = vpop.permute.xlu0 %472
  %vm474 = vcmp.lt.s32.totalorder %v374, 15
  %v475 = vsel %vm474, %v467, %v471
  %v476 = vsel %vm474, %v469, %v473
  %v477 = vsel %vm474, %v463, %v467
  %v478 = vsel %vm474, %v465, %v469
  %v479 = vsel %vm474, %v459, %v463
  %v480 = vsel %vm474, %v461, %v465
  %v481 = vsel %vm474, %v471, %v459
  %v482 = vsel %vm474, %v473, %v461
  %s483 = scalar_lea.vmem %s4, 128
  %v484 = vld [vmem:[%s483] sm:$0xff]
  %v485 = vld [vmem:[%s483 + $0x8] sm:$0xff]
  %v486 = vld [vmem:[%s483 + $0x10] sm:$0xff]
  %v487 = vld [vmem:[%s483 + $0x18] sm:$0xff]
  %v488 = vld [vmem:[%s483 + $0x20] sm:$0xff]
  %v489 = vld [vmem:[%s483 + $0x28] sm:$0xff]
  %v490 = vld [vmem:[%s483 + $0x30] sm:$0xff]
  %v491 = vld [vmem:[%s483 + $0x38] sm:$0xff]
  %v492 = vmul.f32 %v481, %v484
  %v493 = vmul.f32 %v479, %v485
  %v494 = vmul.f32 %v477, %v486
  %v495 = vmul.f32 %v475, %v487
  %v496 = vmul.f32 %v482, %v488
  %v497 = vmul.f32 %v480, %v489
  %v498 = vmul.f32 %v478, %v490
  %v499 = vmul.f32 %v476, %v491
  %v500 = vadd.f32 %v450, %v492
  %v501 = vadd.f32 %v451, %v493
  %v502 = vadd.f32 %v452, %v494
  %v503 = vadd.f32 %v453, %v495
  %v504 = vadd.f32 %v454, %v496
  %v505 = vadd.f32 %v455, %v497
  %v506 = vadd.f32 %v456, %v498
  %v507 = vadd.f32 %v457, %v499
  %508 = vrot.lane.b32.xlu0 %v349, 1
  %v509 = vpop.permute.xlu0 %508
  %510 = vrot.lane.b32.xlu0 %v353, 1
  %v511 = vpop.permute.xlu0 %510
  %512 = vrot.lane.b32.xlu0 %v350, 1
  %v513 = vpop.permute.xlu0 %512
  %514 = vrot.lane.b32.xlu0 %v354, 1
  %v515 = vpop.permute.xlu0 %514
  %516 = vrot.lane.b32.xlu0 %v351, 1
  %v517 = vpop.permute.xlu0 %516
  %518 = vrot.lane.b32.xlu0 %v355, 1
  %v519 = vpop.permute.xlu0 %518
  %520 = vrot.lane.b32.xlu0 %v352, 1
  %v521 = vpop.permute.xlu0 %520
  %522 = vrot.lane.b32.xlu0 %v356, 1
  %v523 = vpop.permute.xlu0 %522
  %vm524 = vcmp.lt.s32.totalorder %v374, 1
  %v525 = vsel %vm524, %v517, %v521
  %v526 = vsel %vm524, %v519, %v523
  %v527 = vsel %vm524, %v513, %v517
  %v528 = vsel %vm524, %v515, %v519
  %v529 = vsel %vm524, %v509, %v513
  %v530 = vsel %vm524, %v511, %v515
  %v531 = vsel %vm524, %v521, %v509
  %v532 = vsel %vm524, %v523, %v511
  %s533 = scalar_lea.vmem %s4, 192
  %v534 = vld [vmem:[%s533] sm:$0xff]
  %v535 = vld [vmem:[%s533 + $0x8] sm:$0xff]
  %v536 = vld [vmem:[%s533 + $0x10] sm:$0xff]
  %v537 = vld [vmem:[%s533 + $0x18] sm:$0xff]
  %v538 = vld [vmem:[%s533 + $0x20] sm:$0xff]
  %v539 = vld [vmem:[%s533 + $0x28] sm:$0xff]
  %v540 = vld [vmem:[%s533 + $0x30] sm:$0xff]
  %v541 = vld [vmem:[%s533 + $0x38] sm:$0xff]
  %v542 = vmul.f32 %v531, %v534
  %v543 = vmul.f32 %v529, %v535
  %v544 = vmul.f32 %v527, %v536
  %v545 = vmul.f32 %v525, %v537
  %v546 = vmul.f32 %v532, %v538
  %v547 = vmul.f32 %v530, %v539
  %v548 = vmul.f32 %v528, %v540
  %v549 = vmul.f32 %v526, %v541
  %v550 = vadd.f32 %v500, %v542
  %v551 = vadd.f32 %v501, %v543
  %v552 = vadd.f32 %v502, %v544
  %v553 = vadd.f32 %v503, %v545
  %v554 = vadd.f32 %v504, %v546
  %v555 = vadd.f32 %v505, %v547
  %v556 = vadd.f32 %v506, %v548
  %v557 = vadd.f32 %v507, %v549
  %s558 = scalar_lea.vmem %s4, 256
  %v559 = vld [vmem:[%s558] sm:$0xff]
  %v560 = vld [vmem:[%s558 + $0x8] sm:$0xff]
  %v561 = vld [vmem:[%s558 + $0x10] sm:$0xff]
  %v562 = vld [vmem:[%s558 + $0x18] sm:$0xff]
  %v563 = vld [vmem:[%s558 + $0x20] sm:$0xff]
  %v564 = vld [vmem:[%s558 + $0x28] sm:$0xff]
  %v565 = vld [vmem:[%s558 + $0x30] sm:$0xff]
  %v566 = vld [vmem:[%s558 + $0x38] sm:$0xff]
  %v567 = vmul.f32 %v349, %v559
  %v568 = vmul.f32 %v350, %v560
  %v569 = vmul.f32 %v351, %v561
  %v570 = vmul.f32 %v352, %v562
  %v571 = vmul.f32 %v353, %v563
  %v572 = vmul.f32 %v354, %v564
  %v573 = vmul.f32 %v355, %v565
  %v574 = vmul.f32 %v356, %v566
  %v575 = vadd.f32 %v550, %v567
  %v576 = vadd.f32 %v551, %v568
  %v577 = vadd.f32 %v552, %v569
  %v578 = vadd.f32 %v553, %v570
  %v579 = vadd.f32 %v554, %v571
  %v580 = vadd.f32 %v555, %v572
  %v581 = vadd.f32 %v556, %v573
  %v582 = vadd.f32 %v557, %v574
  %583 = vrot.lane.b32.xlu0 %v349, 127
  %v584 = vpop.permute.xlu0 %583
  %585 = vrot.lane.b32.xlu0 %v353, 127
  %v586 = vpop.permute.xlu0 %585
  %587 = vrot.lane.b32.xlu0 %v350, 127
  %v588 = vpop.permute.xlu0 %587
  %589 = vrot.lane.b32.xlu0 %v354, 127
  %v590 = vpop.permute.xlu0 %589
  %591 = vrot.lane.b32.xlu0 %v351, 127
  %v592 = vpop.permute.xlu0 %591
  %593 = vrot.lane.b32.xlu0 %v355, 127
  %v594 = vpop.permute.xlu0 %593
  %595 = vrot.lane.b32.xlu0 %v352, 127
  %v596 = vpop.permute.xlu0 %595
  %597 = vrot.lane.b32.xlu0 %v356, 127
  %v598 = vpop.permute.xlu0 %597
  %vm599 = vcmp.lt.s32.totalorder %v374, 127
  %v600 = vsel %vm599, %v592, %v596
  %v601 = vsel %vm599, %v594, %v598
  %v602 = vsel %vm599, %v588, %v592
  %v603 = vsel %vm599, %v590, %v594
  %v604 = vsel %vm599, %v584, %v588
  %v605 = vsel %vm599, %v586, %v590
  %v606 = vsel %vm599, %v596, %v584
  %v607 = vsel %vm599, %v598, %v586
  %s608 = scalar_lea.vmem %s4, 320
  %v609 = vld [vmem:[%s608] sm:$0xff]
  %v610 = vld [vmem:[%s608 + $0x8] sm:$0xff]
  %v611 = vld [vmem:[%s608 + $0x10] sm:$0xff]
  %v612 = vld [vmem:[%s608 + $0x18] sm:$0xff]
  %v613 = vld [vmem:[%s608 + $0x20] sm:$0xff]
  %v614 = vld [vmem:[%s608 + $0x28] sm:$0xff]
  %v615 = vld [vmem:[%s608 + $0x30] sm:$0xff]
  %v616 = vld [vmem:[%s608 + $0x38] sm:$0xff]
  %v617 = vmul.f32 %v604, %v609
  %v618 = vmul.f32 %v602, %v610
  %v619 = vmul.f32 %v600, %v611
  %v620 = vmul.f32 %v606, %v612
  %v621 = vmul.f32 %v605, %v613
  %v622 = vmul.f32 %v603, %v614
  %v623 = vmul.f32 %v601, %v615
  %v624 = vmul.f32 %v607, %v616
  %v625 = vadd.f32 %v575, %v617
  %v626 = vadd.f32 %v576, %v618
  %v627 = vadd.f32 %v577, %v619
  %v628 = vadd.f32 %v578, %v620
  %v629 = vadd.f32 %v579, %v621
  %v630 = vadd.f32 %v580, %v622
  %v631 = vadd.f32 %v581, %v623
  %v632 = vadd.f32 %v582, %v624
  %633 = vrot.lane.b32.xlu0 %v349, 113
  %v634 = vpop.permute.xlu0 %633
  %635 = vrot.lane.b32.xlu0 %v353, 113
  %v636 = vpop.permute.xlu0 %635
  %637 = vrot.lane.b32.xlu0 %v350, 113
  %v638 = vpop.permute.xlu0 %637
  %639 = vrot.lane.b32.xlu0 %v354, 113
  %v640 = vpop.permute.xlu0 %639
  %641 = vrot.lane.b32.xlu0 %v351, 113
  %v642 = vpop.permute.xlu0 %641
  %643 = vrot.lane.b32.xlu0 %v355, 113
  %v644 = vpop.permute.xlu0 %643
  %645 = vrot.lane.b32.xlu0 %v352, 113
  %v646 = vpop.permute.xlu0 %645
  %647 = vrot.lane.b32.xlu0 %v356, 113
  %v648 = vpop.permute.xlu0 %647
  %vm649 = vcmp.lt.s32.totalorder %v374, 113
  %v650 = vsel %vm649, %v642, %v646
  %v651 = vsel %vm649, %v644, %v648
  %v652 = vsel %vm649, %v638, %v642
  %v653 = vsel %vm649, %v640, %v644
  %v654 = vsel %vm649, %v634, %v638
  %v655 = vsel %vm649, %v636, %v640
  %v656 = vsel %vm649, %v646, %v634
  %v657 = vsel %vm649, %v648, %v636
  %s658 = scalar_lea.vmem %s4, 384
  %v659 = vld [vmem:[%s658] sm:$0xff]
  %v660 = vld [vmem:[%s658 + $0x8] sm:$0xff]
  %v661 = vld [vmem:[%s658 + $0x10] sm:$0xff]
  %v662 = vld [vmem:[%s658 + $0x18] sm:$0xff]
  %v663 = vld [vmem:[%s658 + $0x20] sm:$0xff]
  %v664 = vld [vmem:[%s658 + $0x28] sm:$0xff]
  %v665 = vld [vmem:[%s658 + $0x30] sm:$0xff]
  %v666 = vld [vmem:[%s658 + $0x38] sm:$0xff]
  %v667 = vmul.f32 %v654, %v659
  %v668 = vmul.f32 %v652, %v660
  %v669 = vmul.f32 %v650, %v661
  %v670 = vmul.f32 %v656, %v662
  %v671 = vmul.f32 %v655, %v663
  %v672 = vmul.f32 %v653, %v664
  %v673 = vmul.f32 %v651, %v665
  %v674 = vmul.f32 %v657, %v666
  %v675 = vadd.f32 %v625, %v667
  %v676 = vadd.f32 %v626, %v668
  %v677 = vadd.f32 %v627, %v669
  %v678 = vadd.f32 %v628, %v670
  %v679 = vadd.f32 %v629, %v671
  %v680 = vadd.f32 %v630, %v672
  %v681 = vadd.f32 %v631, %v673
  %v682 = vadd.f32 %v632, %v674
  %683 = vrot.lane.b32.xlu0 %v349, 112
  %v684 = vpop.permute.xlu0 %683
  %685 = vrot.lane.b32.xlu0 %v353, 112
  %v686 = vpop.permute.xlu0 %685
  %687 = vrot.lane.b32.xlu0 %v350, 112
  %v688 = vpop.permute.xlu0 %687
  %689 = vrot.lane.b32.xlu0 %v354, 112
  %v690 = vpop.permute.xlu0 %689
  %691 = vrot.lane.b32.xlu0 %v351, 112
  %v692 = vpop.permute.xlu0 %691
  %693 = vrot.lane.b32.xlu0 %v355, 112
  %v694 = vpop.permute.xlu0 %693
  %695 = vrot.lane.b32.xlu0 %v352, 112
  %v696 = vpop.permute.xlu0 %695
  %697 = vrot.lane.b32.xlu0 %v356, 112
  %v698 = vpop.permute.xlu0 %697
  %vm699 = vcmp.lt.s32.totalorder %v374, 112
  %v700 = vsel %vm699, %v692, %v696
  %v701 = vsel %vm699, %v694, %v698
  %v702 = vsel %vm699, %v688, %v692
  %v703 = vsel %vm699, %v690, %v694
  %v704 = vsel %vm699, %v684, %v688
  %v705 = vsel %vm699, %v686, %v690
  %v706 = vsel %vm699, %v696, %v684
  %v707 = vsel %vm699, %v698, %v686
  %s708 = scalar_lea.vmem %s4, 448
  %v709 = vld [vmem:[%s708] sm:$0xff]
  %v710 = vld [vmem:[%s708 + $0x8] sm:$0xff]
  %v711 = vld [vmem:[%s708 + $0x10] sm:$0xff]
  %v712 = vld [vmem:[%s708 + $0x18] sm:$0xff]
  %v713 = vld [vmem:[%s708 + $0x20] sm:$0xff]
  %v714 = vld [vmem:[%s708 + $0x28] sm:$0xff]
  %v715 = vld [vmem:[%s708 + $0x30] sm:$0xff]
  %v716 = vld [vmem:[%s708 + $0x38] sm:$0xff]
  %v717 = vmul.f32 %v704, %v709
  %v718 = vmul.f32 %v702, %v710
  %v719 = vmul.f32 %v700, %v711
  %v720 = vmul.f32 %v706, %v712
  %v721 = vmul.f32 %v705, %v713
  %v722 = vmul.f32 %v703, %v714
  %v723 = vmul.f32 %v701, %v715
  %v724 = vmul.f32 %v707, %v716
  %v725 = vadd.f32 %v675, %v717
  %v726 = vadd.f32 %v676, %v718
  %v727 = vadd.f32 %v677, %v719
  %v728 = vadd.f32 %v678, %v720
  %v729 = vadd.f32 %v679, %v721
  %v730 = vadd.f32 %v680, %v722
  %v731 = vadd.f32 %v681, %v723
  %v732 = vadd.f32 %v682, %v724
  %733 = vrot.lane.b32.xlu0 %v349, 111
  %v734 = vpop.permute.xlu0 %733
  %735 = vrot.lane.b32.xlu0 %v353, 111
  %v736 = vpop.permute.xlu0 %735
  %737 = vrot.lane.b32.xlu0 %v350, 111
  %v738 = vpop.permute.xlu0 %737
  %739 = vrot.lane.b32.xlu0 %v354, 111
  %v740 = vpop.permute.xlu0 %739
  %741 = vrot.lane.b32.xlu0 %v351, 111
  %v742 = vpop.permute.xlu0 %741
  %743 = vrot.lane.b32.xlu0 %v355, 111
  %v744 = vpop.permute.xlu0 %743
  %745 = vrot.lane.b32.xlu0 %v352, 111
  %v746 = vpop.permute.xlu0 %745
  %747 = vrot.lane.b32.xlu0 %v356, 111
  %v748 = vpop.permute.xlu0 %747
  %vm749 = vcmp.lt.s32.totalorder %v374, 111
  %v750 = vsel %vm749, %v742, %v746
  %v751 = vsel %vm749, %v744, %v748
  %v752 = vsel %vm749, %v738, %v742
  %v753 = vsel %vm749, %v740, %v744
  %v754 = vsel %vm749, %v734, %v738
  %v755 = vsel %vm749, %v736, %v740
  %v756 = vsel %vm749, %v746, %v734
  %v757 = vsel %vm749, %v748, %v736
  %s758 = scalar_lea.vmem %s4, 512
  %v759 = vld [vmem:[%s758] sm:$0xff]
  %v760 = vld [vmem:[%s758 + $0x8] sm:$0xff]
  %v761 = vld [vmem:[%s758 + $0x10] sm:$0xff]
  %v762 = vld [vmem:[%s758 + $0x18] sm:$0xff]
  %v763 = vld [vmem:[%s758 + $0x20] sm:$0xff]
  %v764 = vld [vmem:[%s758 + $0x28] sm:$0xff]
  %v765 = vld [vmem:[%s758 + $0x30] sm:$0xff]
  %v766 = vld [vmem:[%s758 + $0x38] sm:$0xff]
  %v767 = vmul.f32 %v754, %v759
  %v768 = vmul.f32 %v752, %v760
  %v769 = vmul.f32 %v750, %v761
  %v770 = vmul.f32 %v756, %v762
  %v771 = vmul.f32 %v755, %v763
  %v772 = vmul.f32 %v753, %v764
  %v773 = vmul.f32 %v751, %v765
  %v774 = vmul.f32 %v757, %v766
  %v775 = vadd.f32 %v725, %v767
  %v776 = vadd.f32 %v726, %v768
  %v777 = vadd.f32 %v727, %v769
  %v778 = vadd.f32 %v728, %v770
  %v779 = vadd.f32 %v729, %v771
  %v780 = vadd.f32 %v730, %v772
  %v781 = vadd.f32 %v731, %v773
  %v782 = vadd.f32 %v732, %v774
  %v783 = vld [vmem:[%s5] sm:$0xff]
  %v784 = vld [vmem:[%s5 + $0x8] sm:$0xff]
  %v785 = vld [vmem:[%s6] sm:$0xff]
  %v786 = vld [vmem:[%s6 + $0x8] sm:$0xff]
  %v787 = vadd.f32 %v775, %v776
  %v788 = vadd.f32 %v787, %v777
  %v789 = vadd.f32 %v788, %v778
  %790 = vadd.xlane.f32.xlu0 %v789
  %v791 = vpop.xlane.xlu0 %790
  %v792 = vadd.f32 %v779, %v780
  %v793 = vadd.f32 %v792, %v781
  %v794 = vadd.f32 %v793, %v782
  %795 = vadd.xlane.f32.xlu0 %v794
  %v796 = vpop.xlane.xlu0 %795
  %v797 = vmul.f32 %v791, %v228
  %v798 = vmul.f32 %v796, %v228
  %v799 = vsub.f32 %v775, %v797
  %v800 = vsub.f32 %v776, %v797
  %v801 = vsub.f32 %v777, %v797
  %v802 = vsub.f32 %v778, %v797
  %v803 = vsub.f32 %v779, %v798
  %v804 = vsub.f32 %v780, %v798
  %v805 = vsub.f32 %v781, %v798
  %v806 = vsub.f32 %v782, %v798
  %v807 = vmul.f32 %v799, %v799
  %v808 = vmul.f32 %v800, %v800
  %v809 = vmul.f32 %v801, %v801
  %v810 = vmul.f32 %v802, %v802
  %v811 = vmul.f32 %v803, %v803
  %v812 = vmul.f32 %v804, %v804
  %v813 = vmul.f32 %v805, %v805
  %v814 = vmul.f32 %v806, %v806
  %v815 = vadd.f32 %v807, %v808
  %v816 = vadd.f32 %v815, %v809
  %v817 = vadd.f32 %v816, %v810
  %818 = vadd.xlane.f32.xlu0 %v817
  %v819 = vpop.xlane.xlu0 %818
  %v820 = vadd.f32 %v811, %v812
  %v821 = vadd.f32 %v820, %v813
  %v822 = vadd.f32 %v821, %v814
  %823 = vadd.xlane.f32.xlu0 %v822
  %v824 = vpop.xlane.xlu0 %823
  %v825 = vmul.f32 %v819, %v228
  %v826 = vmul.f32 %v824, %v228
  %v827 = vadd.f32 %v825, 1e-05
  %v828 = vadd.f32 %v826, 1e-05
  %v829 = vrsqrt.pop %v827
  %v830 = vrsqrt.pop %v828
  %v831 = vmul.f32 %v783, %v829
  %v832 = vmul.f32 %v784, %v830
  %834 = vset.pattern.permute.xlu0 0
  %835 = vperm.xlu0 %834, %v831
  %v836 = vpop.permute.xlu0 %835
  %839 = vset.pattern.permute.xlu0 0
  %840 = vperm.xlu0 %839, %v832
  %v841 = vpop.permute.xlu0 %840
  %v843 = vmul.f32 %v799, %v836
  %v844 = vmul.f32 %v800, %v836
  %v845 = vmul.f32 %v801, %v836
  %v846 = vmul.f32 %v802, %v836
  %v847 = vmul.f32 %v803, %v841
  %v848 = vmul.f32 %v804, %v841
  %v849 = vmul.f32 %v805, %v841
  %v850 = vmul.f32 %v806, %v841
  %852 = vset.pattern.permute.xlu0 0
  %853 = vperm.xlu0 %852, %v785
  %v854 = vpop.permute.xlu0 %853
  %857 = vset.pattern.permute.xlu0 0
  %858 = vperm.xlu0 %857, %v786
  %v859 = vpop.permute.xlu0 %858
  %v861 = vadd.f32 %v843, %v854
  %v862 = vadd.f32 %v844, %v854
  %v863 = vadd.f32 %v845, %v854
  %v864 = vadd.f32 %v846, %v854
  %v865 = vadd.f32 %v847, %v859
  %v866 = vadd.f32 %v848, %v859
  %v867 = vadd.f32 %v849, %v859
  %v868 = vadd.f32 %v850, %v859
  %v869 = vld [vmem:[%s8] sm:$0xff]
  %v870 = vld [vmem:[%s8 + $0x8] sm:$0xff]
  %v871 = vld [vmem:[%s8 + $0x10] sm:$0xff]
  %v872 = vld [vmem:[%s8 + $0x18] sm:$0xff]
  %v873 = vld [vmem:[%s8 + $0x20] sm:$0xff]
  %v874 = vld [vmem:[%s8 + $0x28] sm:$0xff]
  %v875 = vld [vmem:[%s8 + $0x30] sm:$0xff]
  %v876 = vld [vmem:[%s8 + $0x38] sm:$0xff]
  %v877 = vld [vmem:[%s8 + $0x40] sm:$0xff]
  %v878 = vld [vmem:[%s8 + $0x48] sm:$0xff]
  %v879 = vld [vmem:[%s8 + $0x50] sm:$0xff]
  %v880 = vld [vmem:[%s8 + $0x58] sm:$0xff]
  %v881 = vld [vmem:[%s8 + $0x60] sm:$0xff]
  %v882 = vld [vmem:[%s8 + $0x68] sm:$0xff]
  %v883 = vld [vmem:[%s8 + $0x70] sm:$0xff]
  %v884 = vld [vmem:[%s8 + $0x78] sm:$0xff]
  %v885 = vld [vmem:[%s8 + $0x80] sm:$0xff]
  %v886 = vld [vmem:[%s8 + $0x88] sm:$0xff]
  %v887 = vld [vmem:[%s8 + $0x90] sm:$0xff]
  %v888 = vld [vmem:[%s8 + $0x98] sm:$0xff]
  %v889 = vld [vmem:[%s8 + $0xa0] sm:$0xff]
  %v890 = vld [vmem:[%s8 + $0xa8] sm:$0xff]
  %v891 = vld [vmem:[%s8 + $0xb0] sm:$0xff]
  %v892 = vld [vmem:[%s8 + $0xb8] sm:$0xff]
  %v893 = vld [vmem:[%s8 + $0xc0] sm:$0xff]
  %v894 = vld [vmem:[%s8 + $0xc8] sm:$0xff]
  %v895 = vld [vmem:[%s8 + $0xd0] sm:$0xff]
  %v896 = vld [vmem:[%s8 + $0xd8] sm:$0xff]
  %v897 = vld [vmem:[%s8 + $0xe0] sm:$0xff]
  %v898 = vld [vmem:[%s8 + $0xe8] sm:$0xff]
  %v899 = vld [vmem:[%s8 + $0xf0] sm:$0xff]
  %v900 = vld [vmem:[%s8 + $0xf8] sm:$0xff]
  %v901 = vld [vmem:[%s8 + $0x100] sm:$0xff]
  %v902 = vld [vmem:[%s8 + $0x108] sm:$0xff]
  %v903 = vld [vmem:[%s8 + $0x110] sm:$0xff]
  %v904 = vld [vmem:[%s8 + $0x118] sm:$0xff]
  %v905 = vld [vmem:[%s8 + $0x120] sm:$0xff]
  %v906 = vld [vmem:[%s8 + $0x128] sm:$0xff]
  %v907 = vld [vmem:[%s8 + $0x130] sm:$0xff]
  %v908 = vld [vmem:[%s8 + $0x138] sm:$0xff]
  %v909 = vld [vmem:[%s8 + $0x140] sm:$0xff]
  %v910 = vld [vmem:[%s8 + $0x148] sm:$0xff]
  %v911 = vld [vmem:[%s8 + $0x150] sm:$0xff]
  %v912 = vld [vmem:[%s8 + $0x158] sm:$0xff]
  %v913 = vld [vmem:[%s8 + $0x160] sm:$0xff]
  %v914 = vld [vmem:[%s8 + $0x168] sm:$0xff]
  %v915 = vld [vmem:[%s8 + $0x170] sm:$0xff]
  %v916 = vld [vmem:[%s8 + $0x178] sm:$0xff]
  %v917 = vld [vmem:[%s8 + $0x180] sm:$0xff]
  %v918 = vld [vmem:[%s8 + $0x188] sm:$0xff]
  %v919 = vld [vmem:[%s8 + $0x190] sm:$0xff]
  %v920 = vld [vmem:[%s8 + $0x198] sm:$0xff]
  %v921 = vld [vmem:[%s8 + $0x1a0] sm:$0xff]
  %v922 = vld [vmem:[%s8 + $0x1a8] sm:$0xff]
  %v923 = vld [vmem:[%s8 + $0x1b0] sm:$0xff]
  %v924 = vld [vmem:[%s8 + $0x1b8] sm:$0xff]
  %v925 = vld [vmem:[%s8 + $0x1c0] sm:$0xff]
  %v926 = vld [vmem:[%s8 + $0x1c8] sm:$0xff]
  %v927 = vld [vmem:[%s8 + $0x1d0] sm:$0xff]
  %v928 = vld [vmem:[%s8 + $0x1d8] sm:$0xff]
  %v929 = vld [vmem:[%s8 + $0x1e0] sm:$0xff]
  %v930 = vld [vmem:[%s8 + $0x1e8] sm:$0xff]
  %v931 = vld [vmem:[%s8 + $0x1f0] sm:$0xff]
  %v932 = vld [vmem:[%s8 + $0x1f8] sm:$0xff]
  %933 = vmatprep.subr.mxu0 0.0
  %934 = vmatpush1.msra.mxu0 %v869
  %935 = vmatprep.subr.mxu0 0.0
  %936 = vmatpush1.msra.mxu0 %v870
  %937 = vmatprep.subr.mxu0 0.0
  %938 = vmatpush1.msra.mxu0 %v871
  %939 = vmatprep.subr.mxu0 0.0
  %940 = vmatpush1.msra.mxu0 %v872
  %941 = vmatprep.subr.mxu0 0.0
  %942 = vmatpush1.msra.mxu0 %v873
  %943 = vmatprep.subr.mxu0 0.0
  %944 = vmatpush1.msra.mxu0 %v874
  %945 = vmatprep.subr.mxu0 0.0
  %946 = vmatpush1.msra.mxu0 %v875
  %947 = vmatprep.subr.mxu0 0.0
  %948 = vmatpush1.msra.mxu0 %v876
  %949 = vmatprep.subr.mxu0 0.0
  %950 = vmatpush1.msra.mxu0 %v877
  %951 = vmatprep.subr.mxu0 0.0
  %952 = vmatpush1.msra.mxu0 %v878
  %953 = vmatprep.subr.mxu0 0.0
  %954 = vmatpush1.msra.mxu0 %v879
  %955 = vmatprep.subr.mxu0 0.0
  %956 = vmatpush1.msra.mxu0 %v880
  %957 = vmatprep.subr.mxu0 0.0
  %958 = vmatpush1.msra.mxu0 %v881
  %959 = vmatprep.subr.mxu0 0.0
  %960 = vmatpush1.msra.mxu0 %v882
  %961 = vmatprep.subr.mxu0 0.0
  %962 = vmatpush1.msra.mxu0 %v883
  %963 = vmatprep.subr.mxu0 0.0
  %964 = vmatpush1.msra.mxu0 %v884
  %965 = vmatprep.subr.mxu0 0.0
  %966 = vmatpush1.msra.mxu0 %v885
  %967 = vmatprep.subr.mxu0 0.0
  %968 = vmatpush1.msra.mxu0 %v886
  %969 = vmatprep.subr.mxu0 0.0
  %970 = vmatpush1.msra.mxu0 %v887
  %971 = vmatprep.subr.mxu0 0.0
  %972 = vmatpush1.msra.mxu0 %v888
  %973 = vmatprep.subr.mxu0 0.0
  %974 = vmatpush1.msra.mxu0 %v889
  %975 = vmatprep.subr.mxu0 0.0
  %976 = vmatpush1.msra.mxu0 %v890
  %977 = vmatprep.subr.mxu0 0.0
  %978 = vmatpush1.msra.mxu0 %v891
  %979 = vmatprep.subr.mxu0 0.0
  %980 = vmatpush1.msra.mxu0 %v892
  %981 = vmatprep.subr.mxu0 0.0
  %982 = vmatpush1.msra.mxu0 %v893
  %983 = vmatprep.subr.mxu0 0.0
  %984 = vmatpush1.msra.mxu0 %v894
  %985 = vmatprep.subr.mxu0 0.0
  %986 = vmatpush1.msra.mxu0 %v895
  %987 = vmatprep.subr.mxu0 0.0
  %988 = vmatpush1.msra.mxu0 %v896
  %989 = vmatprep.subr.mxu0 0.0
  %990 = vmatpush1.msra.mxu0 %v897
  %991 = vmatprep.subr.mxu0 0.0
  %992 = vmatpush1.msra.mxu0 %v898
  %993 = vmatprep.subr.mxu0 0.0
  %994 = vmatpush1.msra.mxu0 %v899
  %995 = vmatprep.subr.mxu0 0.0
  %996 = vmatpush1.msra.mxu0 %v900
  %997 = vmatprep.mubr.f32.mxu0 %v862
  %998 = vmatmul.mubr.f32.gmra.mrb[0].mxu0 %v861
  %v999 = vpop.f32.mrb[0].mxu0
  %v1000 = vadd.f32 0.0, %v999
  %v1001 = vpop.f32.mrb[0].mxu0
  %1002 = vmatprep.mubr.f32.mxu0 %v866
  %1003 = vmatmul.mubr.f32.gmra.mrb[0].mxu0 %v865
  %v1004 = vpop.f32.mrb[0].mxu0
  %v1005 = vadd.f32 0.0, %v1004
  %v1006 = vpop.f32.mrb[0].mxu0
  %1007 = vdwg.mxu0
  %1008 = vmatprep.subr.mxu0 0.0
  %1009 = vmatpush1.msra.mxu0 %v901
  %1010 = vmatprep.subr.mxu0 0.0
  %1011 = vmatpush1.msra.mxu0 %v902
  %1012 = vmatprep.subr.mxu0 0.0
  %1013 = vmatpush1.msra.mxu0 %v903
  %1014 = vmatprep.subr.mxu0 0.0
  %1015 = vmatpush1.msra.mxu0 %v904
  %1016 = vmatprep.subr.mxu0 0.0
  %1017 = vmatpush1.msra.mxu0 %v905
  %1018 = vmatprep.subr.mxu0 0.0
  %1019 = vmatpush1.msra.mxu0 %v906
  %1020 = vmatprep.subr.mxu0 0.0
  %1021 = vmatpush1.msra.mxu0 %v907
  %1022 = vmatprep.subr.mxu0 0.0
  %1023 = vmatpush1.msra.mxu0 %v908
  %1024 = vmatprep.subr.mxu0 0.0
  %1025 = vmatpush1.msra.mxu0 %v909
  %1026 = vmatprep.subr.mxu0 0.0
  %1027 = vmatpush1.msra.mxu0 %v910
  %1028 = vmatprep.subr.mxu0 0.0
  %1029 = vmatpush1.msra.mxu0 %v911
  %1030 = vmatprep.subr.mxu0 0.0
  %1031 = vmatpush1.msra.mxu0 %v912
  %1032 = vmatprep.subr.mxu0 0.0
  %1033 = vmatpush1.msra.mxu0 %v913
  %1034 = vmatprep.subr.mxu0 0.0
  %1035 = vmatpush1.msra.mxu0 %v914
  %1036 = vmatprep.subr.mxu0 0.0
  %1037 = vmatpush1.msra.mxu0 %v915
  %1038 = vmatprep.subr.mxu0 0.0
  %1039 = vmatpush1.msra.mxu0 %v916
  %1040 = vmatprep.subr.mxu0 0.0
  %1041 = vmatpush1.msra.mxu0 %v917
  %1042 = vmatprep.subr.mxu0 0.0
  %1043 = vmatpush1.msra.mxu0 %v918
  %1044 = vmatprep.subr.mxu0 0.0
  %1045 = vmatpush1.msra.mxu0 %v919
  %1046 = vmatprep.subr.mxu0 0.0
  %1047 = vmatpush1.msra.mxu0 %v920
  %1048 = vmatprep.subr.mxu0 0.0
  %1049 = vmatpush1.msra.mxu0 %v921
  %1050 = vmatprep.subr.mxu0 0.0
  %1051 = vmatpush1.msra.mxu0 %v922
  %1052 = vmatprep.subr.mxu0 0.0
  %1053 = vmatpush1.msra.mxu0 %v923
  %1054 = vmatprep.subr.mxu0 0.0
  %1055 = vmatpush1.msra.mxu0 %v924
  %1056 = vmatprep.subr.mxu0 0.0
  %1057 = vmatpush1.msra.mxu0 %v925
  %1058 = vmatprep.subr.mxu0 0.0
  %1059 = vmatpush1.msra.mxu0 %v926
  %1060 = vmatprep.subr.mxu0 0.0
  %1061 = vmatpush1.msra.mxu0 %v927
  %1062 = vmatprep.subr.mxu0 0.0
  %1063 = vmatpush1.msra.mxu0 %v928
  %1064 = vmatprep.subr.mxu0 0.0
  %1065 = vmatpush1.msra.mxu0 %v929
  %1066 = vmatprep.subr.mxu0 0.0
  %1067 = vmatpush1.msra.mxu0 %v930
  %1068 = vmatprep.subr.mxu0 0.0
  %1069 = vmatpush1.msra.mxu0 %v931
  %1070 = vmatprep.subr.mxu0 0.0
  %1071 = vmatpush1.msra.mxu0 %v932
  %1072 = vmatprep.mubr.f32.mxu0 %v864
  %1073 = vmatmul.mubr.f32.gmra.mrb[0].mxu0 %v863
  %v1074 = vpop.f32.mrb[0].mxu0
  %v1075 = vadd.f32 %v1000, %v1074
  %v1076 = vpop.f32.mrb[0].mxu0
  %1077 = vmatprep.mubr.f32.mxu0 %v868
  %1078 = vmatmul.mubr.f32.gmra.mrb[0].mxu0 %v867
  %v1079 = vpop.f32.mrb[0].mxu0
  %v1080 = vadd.f32 %v1005, %v1079
  %v1081 = vpop.f32.mrb[0].mxu0
  %1082 = vdwg.mxu0
  %v1083 = vmul.f32 %v1075, 0.00390625
  %v1084 = vmul.f32 %v1080, 0.00390625
  %v1085 = vld [vmem:[%s9] sm:$0xf]
  %vm1086 = vcmask 130048
  %v1088 = vsel %vm1086, %v1085, 0
  %1090 = vmatprep.subr.mxu0 0.0
  %1091 = vmatpush1.msra.mxu0 %v1083
  %1092 = vmatprep.subr.mxu0 0.0
  %1093 = vmatpush1.msra.mxu0 %v1084
  %1094 = vmatprep.subr.mxu0 0.0
  %1095 = vmatpush1.msra.mxu0 0.0
  %1096 = vmatprep.subr.mxu0 0.0
  %1097 = vmatpush1.msra.mxu0 0.0
  %1098 = vmatprep.subr.mxu0 0.0
  %1099 = vmatpush1.msra.mxu0 0.0
  %1100 = vmatprep.subr.mxu0 0.0
  %1101 = vmatpush1.msra.mxu0 0.0
  %1102 = vmatprep.subr.mxu0 0.0
  %1103 = vmatpush1.msra.mxu0 0.0
  %1104 = vmatprep.subr.mxu0 0.0
  %1105 = vmatpush1.msra.mxu0 0.0
  %1106 = vmatprep.subr.mxu0 0.0
  %1107 = vmatpush1.msra.mxu0 0.0
  %1108 = vmatprep.subr.mxu0 0.0
  %1109 = vmatpush1.msra.mxu0 0.0
  %1110 = vmatprep.subr.mxu0 0.0
  %1111 = vmatpush1.msra.mxu0 0.0
  %1112 = vmatprep.subr.mxu0 0.0
  %1113 = vmatpush1.msra.mxu0 0.0
  %1114 = vmatprep.subr.mxu0 0.0
  %1115 = vmatpush1.msra.mxu0 0.0
  %1116 = vmatprep.subr.mxu0 0.0
  %1117 = vmatpush1.msra.mxu0 0.0
  %1118 = vmatprep.subr.mxu0 0.0
  %1119 = vmatpush1.msra.mxu0 0.0
  %1120 = vmatprep.subr.mxu0 0.0
  %1121 = vmatpush1.msra.mxu0 0.0
  %1122 = vmatprep.subr.mxu0 0.0
  %1123 = vmatpush1.msra.mxu0 0.0
  %1124 = vmatprep.subr.mxu0 0.0
  %1125 = vmatpush1.msra.mxu0 0.0
  %1126 = vmatprep.subr.mxu0 0.0
  %1127 = vmatpush1.msra.mxu0 0.0
  %1128 = vmatprep.subr.mxu0 0.0
  %1129 = vmatpush1.msra.mxu0 0.0
  %1130 = vmatprep.subr.mxu0 0.0
  %1131 = vmatpush1.msra.mxu0 0.0
  %1132 = vmatprep.subr.mxu0 0.0
  %1133 = vmatpush1.msra.mxu0 0.0
  %1134 = vmatprep.subr.mxu0 0.0
  %1135 = vmatpush1.msra.mxu0 0.0
  %1136 = vmatprep.subr.mxu0 0.0
  %1137 = vmatpush1.msra.mxu0 0.0
  %1138 = vmatprep.subr.mxu0 0.0
  %1139 = vmatpush1.msra.mxu0 0.0
  %1140 = vmatprep.subr.mxu0 0.0
  %1141 = vmatpush1.msra.mxu0 0.0
  %1142 = vmatprep.subr.mxu0 0.0
  %1143 = vmatpush1.msra.mxu0 0.0
  %1144 = vmatprep.subr.mxu0 0.0
  %1145 = vmatpush1.msra.mxu0 0.0
  %1146 = vmatprep.subr.mxu0 0.0
  %1147 = vmatpush1.msra.mxu0 0.0
  %1148 = vmatprep.subr.mxu0 0.0
  %1149 = vmatpush1.msra.mxu0 0.0
  %1150 = vmatprep.subr.mxu0 0.0
  %1151 = vmatpush1.msra.mxu0 0.0
  %1152 = vmatprep.subr.mxu0 0.0
  %1153 = vmatpush1.msra.mxu0 0.0
  %1154 = vmatprep.mubr.f32.mxu0 0.0
  %1155 = vmatmul.mubr.f32.gmra.mrb[0].mxu0 %v1088
  %v1156 = vpop.f32.mrb[0].mxu0
  %v1157 = vadd.f32 0.0, %v1156
  %v1158 = vpop.f32.mrb[0].mxu0
  %1159 = vdwg.mxu0
  %v1160 = vmax.f32 %v1157, 0.0
  %v1161 = vld [vmem:[%s10] sm:$0xff]
  %v1162 = vld [vmem:[%s10 + $0x8] sm:$0xff]
  %vm1163 = vcmask 31744
  %v1165 = vsel %vm1163, %v1161, 0
  %v1168 = vsel %vm1163, %v1162, 0
  %vm1170 = vcmask 1043456
  %v1172 = vsel %vm1170, %v1160, 0
  %1174 = vmatprep.subr.mxu0 0.0
  %1175 = vmatpush1.msra.mxu0 %v1172
  %1176 = vmatprep.subr.mxu0 0.0
  %1177 = vmatpush1.msra.mxu0 0.0
  %1178 = vmatprep.subr.mxu0 0.0
  %1179 = vmatpush1.msra.mxu0 0.0
  %1180 = vmatprep.subr.mxu0 0.0
  %1181 = vmatpush1.msra.mxu0 0.0
  %1182 = vmatprep.subr.mxu0 0.0
  %1183 = vmatpush1.msra.mxu0 0.0
  %1184 = vmatprep.subr.mxu0 0.0
  %1185 = vmatpush1.msra.mxu0 0.0
  %1186 = vmatprep.subr.mxu0 0.0
  %1187 = vmatpush1.msra.mxu0 0.0
  %1188 = vmatprep.subr.mxu0 0.0
  %1189 = vmatpush1.msra.mxu0 0.0
  %1190 = vmatprep.subr.mxu0 0.0
  %1191 = vmatpush1.msra.mxu0 0.0
  %1192 = vmatprep.subr.mxu0 0.0
  %1193 = vmatpush1.msra.mxu0 0.0
  %1194 = vmatprep.subr.mxu0 0.0
  %1195 = vmatpush1.msra.mxu0 0.0
  %1196 = vmatprep.subr.mxu0 0.0
  %1197 = vmatpush1.msra.mxu0 0.0
  %1198 = vmatprep.subr.mxu0 0.0
  %1199 = vmatpush1.msra.mxu0 0.0
  %1200 = vmatprep.subr.mxu0 0.0
  %1201 = vmatpush1.msra.mxu0 0.0
  %1202 = vmatprep.subr.mxu0 0.0
  %1203 = vmatpush1.msra.mxu0 0.0
  %1204 = vmatprep.subr.mxu0 0.0
  %1205 = vmatpush1.msra.mxu0 0.0
  %1206 = vmatprep.subr.mxu0 0.0
  %1207 = vmatpush1.msra.mxu0 0.0
  %1208 = vmatprep.subr.mxu0 0.0
  %1209 = vmatpush1.msra.mxu0 0.0
  %1210 = vmatprep.subr.mxu0 0.0
  %1211 = vmatpush1.msra.mxu0 0.0
  %1212 = vmatprep.subr.mxu0 0.0
  %1213 = vmatpush1.msra.mxu0 0.0
  %1214 = vmatprep.subr.mxu0 0.0
  %1215 = vmatpush1.msra.mxu0 0.0
  %1216 = vmatprep.subr.mxu0 0.0
  %1217 = vmatpush1.msra.mxu0 0.0
  %1218 = vmatprep.subr.mxu0 0.0
  %1219 = vmatpush1.msra.mxu0 0.0
  %1220 = vmatprep.subr.mxu0 0.0
  %1221 = vmatpush1.msra.mxu0 0.0
  %1222 = vmatprep.subr.mxu0 0.0
  %1223 = vmatpush1.msra.mxu0 0.0
  %1224 = vmatprep.subr.mxu0 0.0
  %1225 = vmatpush1.msra.mxu0 0.0
  %1226 = vmatprep.subr.mxu0 0.0
  %1227 = vmatpush1.msra.mxu0 0.0
  %1228 = vmatprep.subr.mxu0 0.0
  %1229 = vmatpush1.msra.mxu0 0.0
  %1230 = vmatprep.subr.mxu0 0.0
  %1231 = vmatpush1.msra.mxu0 0.0
  %1232 = vmatprep.subr.mxu0 0.0
  %1233 = vmatpush1.msra.mxu0 0.0
  %1234 = vmatprep.subr.mxu0 0.0
  %1235 = vmatpush1.msra.mxu0 0.0
  %1236 = vmatprep.subr.mxu0 0.0
  %1237 = vmatpush1.msra.mxu0 0.0
  %1238 = vmatprep.mubr.f32.mxu0 0.0
  %1239 = vmatmul.mubr.f32.gmra.mrb[0].mxu0 %v1165
  %v1240 = vpop.f32.mrb[0].mxu0
  %v1241 = vadd.f32 0.0, %v1240
  %v1242 = vpop.f32.mrb[0].mxu0
  %1243 = vmatprep.mubr.f32.mxu0 0.0
  %1244 = vmatmul.mubr.f32.gmra.mrb[0].mxu0 %v1168
  %v1245 = vpop.f32.mrb[0].mxu0
  %v1246 = vadd.f32 0.0, %v1245
  %v1247 = vpop.f32.mrb[0].mxu0
  %1248 = vdwg.mxu0
  %v1249 = vxor.u32 %v1241, 2147483648
  %v1250 = vxor.u32 %v1246, 2147483648
  %v1251 = vmul.f32 %v1249, 1.442695
  %v1252 = vpow.pop %v1251
  %v1253 = vmul.f32 %v1250, 1.442695
  %v1254 = vpow.pop %v1253
  %v1255 = vadd.f32 %v1252, 1.0
  %v1256 = vadd.f32 %v1254, 1.0
  %v1257 = vrcp.pop %v1255
  %v1258 = vmul.f32 1.0, %v1257
  %v1259 = vrcp.pop %v1256
  %v1260 = vmul.f32 1.0, %v1259
  %v1261 = vld [vmem:[%s7] sm:$0xff]
  %v1263 = vcombine.high %v1261, %v1261
  %v1265 = vunpack.c.l.s4 1983009808
  %v1266 = vunpack.c.0.s8 %v1265
  %v1267 = vlaneseq
  %v1268 = vshrl.u32 %v1267, 7
  %v1269 = vsub.s32 %v1266, %v1268
  %v1270 = vrot.slane %v1261, %v1269
  %v1272 = vunpack.c.l.s4 1983009808
  %v1273 = vunpack.c.0.s8 %v1272
  %v1274 = vlaneseq
  %v1275 = vshrl.u32 %v1274, 7
  %v1276 = vsub.s32 %v1273, %v1275
  %v1277 = vrot.slane %v1263, %v1276
  %v1278 = vcombine.high %v1270, %v1270
  %v1279 = vcombine.high %v1277, %v1277
  %vm1280 = vcmask 15360
  %v1282 = vsel %vm1280, %v1258, 0
  %v1285 = vsel %vm1280, %v1260, 0
  %vm1287 = vcmask 1041408
  %v1288 = vsel %vm1287, %v1270, 0
  %v1290 = vsel %vm1287, %v1278, 0
  %v1292 = vsel %vm1287, %v1277, 0
  %v1294 = vsel %vm1287, %v1279, 0
  %1296 = vmatprep.subr.mxu0 %v1290
  %1297 = vmatpush1.msra.mxu0 %v1288
  %1298 = vmatprep.subr.mxu0 0.0
  %1299 = vmatpush1.msra.mxu0 0.0
  %1300 = vmatprep.subr.mxu0 0.0
  %1301 = vmatpush1.msra.mxu0 0.0
  %1302 = vmatprep.subr.mxu0 0.0
  %1303 = vmatpush1.msra.mxu0 0.0
  %1304 = vmatprep.subr.mxu0 0.0
  %1305 = vmatpush1.msra.mxu0 0.0
  %1306 = vmatprep.subr.mxu0 0.0
  %1307 = vmatpush1.msra.mxu0 0.0
  %1308 = vmatprep.subr.mxu0 0.0
  %1309 = vmatpush1.msra.mxu0 0.0
  %1310 = vmatprep.subr.mxu0 0.0
  %1311 = vmatpush1.msra.mxu0 0.0
  %1312 = vmatprep.subr.mxu0 0.0
  %1313 = vmatpush1.msra.mxu0 0.0
  %1314 = vmatprep.subr.mxu0 0.0
  %1315 = vmatpush1.msra.mxu0 0.0
  %1316 = vmatprep.subr.mxu0 0.0
  %1317 = vmatpush1.msra.mxu0 0.0
  %1318 = vmatprep.subr.mxu0 0.0
  %1319 = vmatpush1.msra.mxu0 0.0
  %1320 = vmatprep.subr.mxu0 0.0
  %1321 = vmatpush1.msra.mxu0 0.0
  %1322 = vmatprep.subr.mxu0 0.0
  %1323 = vmatpush1.msra.mxu0 0.0
  %1324 = vmatprep.subr.mxu0 0.0
  %1325 = vmatpush1.msra.mxu0 0.0
  %1326 = vmatprep.subr.mxu0 0.0
  %1327 = vmatpush1.msra.mxu0 0.0
  %1328 = vmatprep.subr.mxu0 0.0
  %1329 = vmatpush1.msra.mxu0 0.0
  %1330 = vmatprep.subr.mxu0 0.0
  %1331 = vmatpush1.msra.mxu0 0.0
  %1332 = vmatprep.subr.mxu0 0.0
  %1333 = vmatpush1.msra.mxu0 0.0
  %1334 = vmatprep.subr.mxu0 0.0
  %1335 = vmatpush1.msra.mxu0 0.0
  %1336 = vmatprep.subr.mxu0 0.0
  %1337 = vmatpush1.msra.mxu0 0.0
  %1338 = vmatprep.subr.mxu0 0.0
  %1339 = vmatpush1.msra.mxu0 0.0
  %1340 = vmatprep.subr.mxu0 0.0
  %1341 = vmatpush1.msra.mxu0 0.0
  %1342 = vmatprep.subr.mxu0 0.0
  %1343 = vmatpush1.msra.mxu0 0.0
  %1344 = vmatprep.subr.mxu0 0.0
  %1345 = vmatpush1.msra.mxu0 0.0
  %1346 = vmatprep.subr.mxu0 0.0
  %1347 = vmatpush1.msra.mxu0 0.0
  %1348 = vmatprep.subr.mxu0 0.0
  %1349 = vmatpush1.msra.mxu0 0.0
  %1350 = vmatprep.subr.mxu0 0.0
  %1351 = vmatpush1.msra.mxu0 0.0
  %1352 = vmatprep.subr.mxu0 0.0
  %1353 = vmatpush1.msra.mxu0 0.0
  %1354 = vmatprep.subr.mxu0 0.0
  %1355 = vmatpush1.msra.mxu0 0.0
  %1356 = vmatprep.subr.mxu0 0.0
  %1357 = vmatpush1.msra.mxu0 0.0
  %1358 = vmatprep.subr.mxu0 0.0
  %1359 = vmatpush1.msra.mxu0 0.0
  %1360 = vmatprep.mubr.f32.mxu0 0.0
  %1361 = vmatmul.mubr.f32.gmra.mrb[0].mxu0 %v1282
  %v1362 = vpop.f32.mrb[0].mxu0
  %v1363 = vadd.f32 0.0, %v1362
  %v1364 = vpop.f32.mrb[0].mxu0
  %v1365 = vadd.f32 0.0, %v1364
  %1366 = vmatprep.mubr.f32.mxu0 0.0
  %1367 = vmatmul.mubr.f32.gmra.mrb[0].mxu0 %v1285
  %v1368 = vpop.f32.mrb[0].mxu0
  %v1369 = vadd.f32 0.0, %v1368
  %v1370 = vpop.f32.mrb[0].mxu0
  %v1371 = vadd.f32 0.0, %v1370
  %1372 = vdwg.mxu0
  %1373 = vmatprep.subr.mxu0 %v1294
  %1374 = vmatpush1.msra.mxu0 %v1292
  %1375 = vmatprep.subr.mxu0 0.0
  %1376 = vmatpush1.msra.mxu0 0.0
  %1377 = vmatprep.subr.mxu0 0.0
  %1378 = vmatpush1.msra.mxu0 0.0
  %1379 = vmatprep.subr.mxu0 0.0
  %1380 = vmatpush1.msra.mxu0 0.0
  %1381 = vmatprep.subr.mxu0 0.0
  %1382 = vmatpush1.msra.mxu0 0.0
  %1383 = vmatprep.subr.mxu0 0.0
  %1384 = vmatpush1.msra.mxu0 0.0
  %1385 = vmatprep.subr.mxu0 0.0
  %1386 = vmatpush1.msra.mxu0 0.0
  %1387 = vmatprep.subr.mxu0 0.0
  %1388 = vmatpush1.msra.mxu0 0.0
  %1389 = vmatprep.subr.mxu0 0.0
  %1390 = vmatpush1.msra.mxu0 0.0
  %1391 = vmatprep.subr.mxu0 0.0
  %1392 = vmatpush1.msra.mxu0 0.0
  %1393 = vmatprep.subr.mxu0 0.0
  %1394 = vmatpush1.msra.mxu0 0.0
  %1395 = vmatprep.subr.mxu0 0.0
  %1396 = vmatpush1.msra.mxu0 0.0
  %1397 = vmatprep.subr.mxu0 0.0
  %1398 = vmatpush1.msra.mxu0 0.0
  %1399 = vmatprep.subr.mxu0 0.0
  %1400 = vmatpush1.msra.mxu0 0.0
  %1401 = vmatprep.subr.mxu0 0.0
  %1402 = vmatpush1.msra.mxu0 0.0
  %1403 = vmatprep.subr.mxu0 0.0
  %1404 = vmatpush1.msra.mxu0 0.0
  %1405 = vmatprep.subr.mxu0 0.0
  %1406 = vmatpush1.msra.mxu0 0.0
  %1407 = vmatprep.subr.mxu0 0.0
  %1408 = vmatpush1.msra.mxu0 0.0
  %1409 = vmatprep.subr.mxu0 0.0
  %1410 = vmatpush1.msra.mxu0 0.0
  %1411 = vmatprep.subr.mxu0 0.0
  %1412 = vmatpush1.msra.mxu0 0.0
  %1413 = vmatprep.subr.mxu0 0.0
  %1414 = vmatpush1.msra.mxu0 0.0
  %1415 = vmatprep.subr.mxu0 0.0
  %1416 = vmatpush1.msra.mxu0 0.0
  %1417 = vmatprep.subr.mxu0 0.0
  %1418 = vmatpush1.msra.mxu0 0.0
  %1419 = vmatprep.subr.mxu0 0.0
  %1420 = vmatpush1.msra.mxu0 0.0
  %1421 = vmatprep.subr.mxu0 0.0
  %1422 = vmatpush1.msra.mxu0 0.0
  %1423 = vmatprep.subr.mxu0 0.0
  %1424 = vmatpush1.msra.mxu0 0.0
  %1425 = vmatprep.subr.mxu0 0.0
  %1426 = vmatpush1.msra.mxu0 0.0
  %1427 = vmatprep.subr.mxu0 0.0
  %1428 = vmatpush1.msra.mxu0 0.0
  %1429 = vmatprep.subr.mxu0 0.0
  %1430 = vmatpush1.msra.mxu0 0.0
  %1431 = vmatprep.subr.mxu0 0.0
  %1432 = vmatpush1.msra.mxu0 0.0
  %1433 = vmatprep.subr.mxu0 0.0
  %1434 = vmatpush1.msra.mxu0 0.0
  %1435 = vmatprep.subr.mxu0 0.0
  %1436 = vmatpush1.msra.mxu0 0.0
  %1437 = vmatprep.mubr.f32.mxu0 0.0
  %1438 = vmatmul.mubr.f32.gmra.mrb[0].mxu0 %v1282
  %v1439 = vpop.f32.mrb[0].mxu0
  %v1440 = vadd.f32 0.0, %v1439
  %v1441 = vpop.f32.mrb[0].mxu0
  %v1442 = vadd.f32 0.0, %v1441
  %1443 = vmatprep.mubr.f32.mxu0 0.0
  %1444 = vmatmul.mubr.f32.gmra.mrb[0].mxu0 %v1285
  %v1445 = vpop.f32.mrb[0].mxu0
  %v1446 = vadd.f32 0.0, %v1445
  %v1447 = vpop.f32.mrb[0].mxu0
  %v1448 = vadd.f32 0.0, %v1447
  %1449 = vdwg.mxu0
  %v1450 = vmul.f32 %v861, %v1363
  %v1451 = vmul.f32 %v862, %v1365
  %v1452 = vmul.f32 %v863, %v1440
  %v1453 = vmul.f32 %v864, %v1442
  %v1454 = vmul.f32 %v865, %v1369
  %v1455 = vmul.f32 %v866, %v1371
  %v1456 = vmul.f32 %v867, %v1446
  %v1457 = vmul.f32 %v868, %v1448
  %v1458 = vxor.u32 %v1450, 2147483648
  %v1459 = vxor.u32 %v1451, 2147483648
  %v1460 = vxor.u32 %v1452, 2147483648
  %v1461 = vxor.u32 %v1453, 2147483648
  %v1462 = vxor.u32 %v1454, 2147483648
  %v1463 = vxor.u32 %v1455, 2147483648
  %v1464 = vxor.u32 %v1456, 2147483648
  %v1465 = vxor.u32 %v1457, 2147483648
  %v1466 = vmul.f32 %v1458, 1.442695
  %v1467 = vpow.pop %v1466
  %v1468 = vmul.f32 %v1459, 1.442695
  %v1469 = vpow.pop %v1468
  %v1470 = vmul.f32 %v1460, 1.442695
  %v1471 = vpow.pop %v1470
  %v1472 = vmul.f32 %v1461, 1.442695
  %v1473 = vpow.pop %v1472
  %v1474 = vmul.f32 %v1462, 1.442695
  %v1475 = vpow.pop %v1474
  %v1476 = vmul.f32 %v1463, 1.442695
  %v1477 = vpow.pop %v1476
  %v1478 = vmul.f32 %v1464, 1.442695
  %v1479 = vpow.pop %v1478
  %v1480 = vmul.f32 %v1465, 1.442695
  %v1481 = vpow.pop %v1480
  %v1482 = vadd.f32 %v1467, 1.0
  %v1483 = vadd.f32 %v1469, 1.0
  %v1484 = vadd.f32 %v1471, 1.0
  %v1485 = vadd.f32 %v1473, 1.0
  %v1486 = vadd.f32 %v1475, 1.0
  %v1487 = vadd.f32 %v1477, 1.0
  %v1488 = vadd.f32 %v1479, 1.0
  %v1489 = vadd.f32 %v1481, 1.0
  %v1490 = vrcp.pop %v1482
  %v1491 = vmul.f32 1.0, %v1490
  %v1492 = vrcp.pop %v1483
  %v1493 = vmul.f32 1.0, %v1492
  %v1494 = vrcp.pop %v1484
  %v1495 = vmul.f32 1.0, %v1494
  %v1496 = vrcp.pop %v1485
  %v1497 = vmul.f32 1.0, %v1496
  %v1498 = vrcp.pop %v1486
  %v1499 = vmul.f32 1.0, %v1498
  %v1500 = vrcp.pop %v1487
  %v1501 = vmul.f32 1.0, %v1500
  %v1502 = vrcp.pop %v1488
  %v1503 = vmul.f32 1.0, %v1502
  %v1504 = vrcp.pop %v1489
  %v1505 = vmul.f32 1.0, %v1504
  %v1506 = vmul.f32 %v1450, %v1491
  %v1507 = vmul.f32 %v1451, %v1493
  %v1508 = vmul.f32 %v1452, %v1495
  %v1509 = vmul.f32 %v1453, %v1497
  %v1510 = vmul.f32 %v1454, %v1499
  %v1511 = vmul.f32 %v1455, %v1501
  %v1512 = vmul.f32 %v1456, %v1503
  %v1513 = vmul.f32 %v1457, %v1505
  %v1514 = vld [vmem:[%s11] sm:$0xff]
  %v1516 = vsel %vm1086, %v1514, 0
  %1518 = vmatprep.subr.mxu0 %v1507
  %1519 = vmatpush1.msra.mxu0 %v1506
  %1520 = vmatprep.subr.mxu0 %v1511
  %1521 = vmatpush1.msra.mxu0 %v1510
  %1522 = vmatprep.subr.mxu0 0.0
  %1523 = vmatpush1.msra.mxu0 0.0
  %1524 = vmatprep.subr.mxu0 0.0
  %1525 = vmatpush1.msra.mxu0 0.0
  %1526 = vmatprep.subr.mxu0 0.0
  %1527 = vmatpush1.msra.mxu0 0.0
  %1528 = vmatprep.subr.mxu0 0.0
  %1529 = vmatpush1.msra.mxu0 0.0
  %1530 = vmatprep.subr.mxu0 0.0
  %1531 = vmatpush1.msra.mxu0 0.0
  %1532 = vmatprep.subr.mxu0 0.0
  %1533 = vmatpush1.msra.mxu0 0.0
  %1534 = vmatprep.subr.mxu0 0.0
  %1535 = vmatpush1.msra.mxu0 0.0
  %1536 = vmatprep.subr.mxu0 0.0
  %1537 = vmatpush1.msra.mxu0 0.0
  %1538 = vmatprep.subr.mxu0 0.0
  %1539 = vmatpush1.msra.mxu0 0.0
  %1540 = vmatprep.subr.mxu0 0.0
  %1541 = vmatpush1.msra.mxu0 0.0
  %1542 = vmatprep.subr.mxu0 0.0
  %1543 = vmatpush1.msra.mxu0 0.0
  %1544 = vmatprep.subr.mxu0 0.0
  %1545 = vmatpush1.msra.mxu0 0.0
  %1546 = vmatprep.subr.mxu0 0.0
  %1547 = vmatpush1.msra.mxu0 0.0
  %1548 = vmatprep.subr.mxu0 0.0
  %1549 = vmatpush1.msra.mxu0 0.0
  %1550 = vmatprep.subr.mxu0 0.0
  %1551 = vmatpush1.msra.mxu0 0.0
  %1552 = vmatprep.subr.mxu0 0.0
  %1553 = vmatpush1.msra.mxu0 0.0
  %1554 = vmatprep.subr.mxu0 0.0
  %1555 = vmatpush1.msra.mxu0 0.0
  %1556 = vmatprep.subr.mxu0 0.0
  %1557 = vmatpush1.msra.mxu0 0.0
  %1558 = vmatprep.subr.mxu0 0.0
  %1559 = vmatpush1.msra.mxu0 0.0
  %1560 = vmatprep.subr.mxu0 0.0
  %1561 = vmatpush1.msra.mxu0 0.0
  %1562 = vmatprep.subr.mxu0 0.0
  %1563 = vmatpush1.msra.mxu0 0.0
  %1564 = vmatprep.subr.mxu0 0.0
  %1565 = vmatpush1.msra.mxu0 0.0
  %1566 = vmatprep.subr.mxu0 0.0
  %1567 = vmatpush1.msra.mxu0 0.0
  %1568 = vmatprep.subr.mxu0 0.0
  %1569 = vmatpush1.msra.mxu0 0.0
  %1570 = vmatprep.subr.mxu0 0.0
  %1571 = vmatpush1.msra.mxu0 0.0
  %1572 = vmatprep.subr.mxu0 0.0
  %1573 = vmatpush1.msra.mxu0 0.0
  %1574 = vmatprep.subr.mxu0 0.0
  %1575 = vmatpush1.msra.mxu0 0.0
  %1576 = vmatprep.subr.mxu0 0.0
  %1577 = vmatpush1.msra.mxu0 0.0
  %1578 = vmatprep.subr.mxu0 0.0
  %1579 = vmatpush1.msra.mxu0 0.0
  %1580 = vmatprep.subr.mxu0 0.0
  %1581 = vmatpush1.msra.mxu0 0.0
  %1582 = vmatprep.mubr.f32.mxu0 0.0
  %1583 = vmatmul.mubr.f32.gmra.mrb[0].mxu0 %v1516
  %v1584 = vpop.f32.mrb[0].mxu0
  %v1585 = vadd.f32 0.0, %v1584
  %v1586 = vpop.f32.mrb[0].mxu0
  %v1587 = vadd.f32 0.0, %v1586
  %1588 = vdwg.mxu0
  %1589 = vmatprep.subr.mxu0 %v1509
  %1590 = vmatpush1.msra.mxu0 %v1508
  %1591 = vmatprep.subr.mxu0 %v1513
  %1592 = vmatpush1.msra.mxu0 %v1512
  %1593 = vmatprep.subr.mxu0 0.0
  %1594 = vmatpush1.msra.mxu0 0.0
  %1595 = vmatprep.subr.mxu0 0.0
  %1596 = vmatpush1.msra.mxu0 0.0
  %1597 = vmatprep.subr.mxu0 0.0
  %1598 = vmatpush1.msra.mxu0 0.0
  %1599 = vmatprep.subr.mxu0 0.0
  %1600 = vmatpush1.msra.mxu0 0.0
  %1601 = vmatprep.subr.mxu0 0.0
  %1602 = vmatpush1.msra.mxu0 0.0
  %1603 = vmatprep.subr.mxu0 0.0
  %1604 = vmatpush1.msra.mxu0 0.0
  %1605 = vmatprep.subr.mxu0 0.0
  %1606 = vmatpush1.msra.mxu0 0.0
  %1607 = vmatprep.subr.mxu0 0.0
  %1608 = vmatpush1.msra.mxu0 0.0
  %1609 = vmatprep.subr.mxu0 0.0
  %1610 = vmatpush1.msra.mxu0 0.0
  %1611 = vmatprep.subr.mxu0 0.0
  %1612 = vmatpush1.msra.mxu0 0.0
  %1613 = vmatprep.subr.mxu0 0.0
  %1614 = vmatpush1.msra.mxu0 0.0
  %1615 = vmatprep.subr.mxu0 0.0
  %1616 = vmatpush1.msra.mxu0 0.0
  %1617 = vmatprep.subr.mxu0 0.0
  %1618 = vmatpush1.msra.mxu0 0.0
  %1619 = vmatprep.subr.mxu0 0.0
  %1620 = vmatpush1.msra.mxu0 0.0
  %1621 = vmatprep.subr.mxu0 0.0
  %1622 = vmatpush1.msra.mxu0 0.0
  %1623 = vmatprep.subr.mxu0 0.0
  %1624 = vmatpush1.msra.mxu0 0.0
  %1625 = vmatprep.subr.mxu0 0.0
  %1626 = vmatpush1.msra.mxu0 0.0
  %1627 = vmatprep.subr.mxu0 0.0
  %1628 = vmatpush1.msra.mxu0 0.0
  %1629 = vmatprep.subr.mxu0 0.0
  %1630 = vmatpush1.msra.mxu0 0.0
  %1631 = vmatprep.subr.mxu0 0.0
  %1632 = vmatpush1.msra.mxu0 0.0
  %1633 = vmatprep.subr.mxu0 0.0
  %1634 = vmatpush1.msra.mxu0 0.0
  %1635 = vmatprep.subr.mxu0 0.0
  %1636 = vmatpush1.msra.mxu0 0.0
  %1637 = vmatprep.subr.mxu0 0.0
  %1638 = vmatpush1.msra.mxu0 0.0
  %1639 = vmatprep.subr.mxu0 0.0
  %1640 = vmatpush1.msra.mxu0 0.0
  %1641 = vmatprep.subr.mxu0 0.0
  %1642 = vmatpush1.msra.mxu0 0.0
  %1643 = vmatprep.subr.mxu0 0.0
  %1644 = vmatpush1.msra.mxu0 0.0
  %1645 = vmatprep.subr.mxu0 0.0
  %1646 = vmatpush1.msra.mxu0 0.0
  %1647 = vmatprep.subr.mxu0 0.0
  %1648 = vmatpush1.msra.mxu0 0.0
  %1649 = vmatprep.subr.mxu0 0.0
  %1650 = vmatpush1.msra.mxu0 0.0
  %1651 = vmatprep.subr.mxu0 0.0
  %1652 = vmatpush1.msra.mxu0 0.0
  %1653 = vmatprep.mubr.f32.mxu0 0.0
  %1654 = vmatmul.mubr.f32.gmra.mrb[0].mxu0 %v1516
  %v1655 = vpop.f32.mrb[0].mxu0
  %v1656 = vadd.f32 0.0, %v1655
  %v1657 = vpop.f32.mrb[0].mxu0
  %v1658 = vadd.f32 0.0, %v1657
  %1659 = vdwg.mxu0
  %v1660 = vld [vmem:[%s12] sm:$0xff]
  %v1661 = vld [vmem:[%s13] sm:$0xff]
  %v1662 = vadd.f32 %v1585, %v1587
  %v1663 = vadd.f32 %v1662, %v1656
  %v1664 = vadd.f32 %v1663, %v1658
  %1665 = vadd.xlane.f32.xlu0 %v1664
  %v1666 = vpop.xlane.xlu0 %1665
  %v1667 = vmul.f32 %v1666, %v228
  %v1668 = vsub.f32 %v1585, %v1667
  %v1669 = vsub.f32 %v1587, %v1667
  %v1670 = vsub.f32 %v1656, %v1667
  %v1671 = vsub.f32 %v1658, %v1667
  %v1672 = vmul.f32 %v1668, %v1668
  %v1673 = vmul.f32 %v1669, %v1669
  %v1674 = vmul.f32 %v1670, %v1670
  %v1675 = vmul.f32 %v1671, %v1671
  %v1676 = vadd.f32 %v1672, %v1673
  %v1677 = vadd.f32 %v1676, %v1674
  %v1678 = vadd.f32 %v1677, %v1675
  %1679 = vadd.xlane.f32.xlu0 %v1678
  %v1680 = vpop.xlane.xlu0 %1679
  %v1681 = vmul.f32 %v1680, %v228
  %v1682 = vadd.f32 %v1681, 1e-05
  %v1683 = vrsqrt.pop %v1682
  %v1684 = vmul.f32 %v1660, %v1683
  %1686 = vset.pattern.permute.xlu0 0
  %1687 = vperm.xlu0 %1686, %v1684
  %v1688 = vpop.permute.xlu0 %1687
  %v1690 = vmul.f32 %v1668, %v1688
  %v1691 = vmul.f32 %v1669, %v1688
  %v1692 = vmul.f32 %v1670, %v1688
  %v1693 = vmul.f32 %v1671, %v1688
  %1695 = vset.pattern.permute.xlu0 0
  %1696 = vperm.xlu0 %1695, %v1661
  %v1697 = vpop.permute.xlu0 %1696
  %v1699 = vadd.f32 %v1690, %v1697
  %v1700 = vadd.f32 %v1691, %v1697
  %v1701 = vadd.f32 %v1692, %v1697
  %v1702 = vadd.f32 %v1693, %v1697
  %v1703 = vadd.f32 %v1699, %v47
  %v1704 = vadd.f32 %v1700, %v48
  %v1705 = vadd.f32 %v1701, %v49
  %v1706 = vadd.f32 %v1702, %v50
  %1707 = vst [vmem:[%s14] sm:$0xff] %v1703
  %1708 = vst [vmem:[%s14 + $0x8] sm:$0xff] %v1704
  %1709 = vst [vmem:[%s14 + $0x10] sm:$0xff] %v1705
  %1710 = vst [vmem:[%s14 + $0x18] sm:$0xff] %v1706
  // Predicated region
  $region58: #{mobile_bottleneck.2} parent=0 // pred_check
    _
  $region59: #{mobile_bottleneck.2} parent=0 // pred_check_branch
    %1712 = sbr.rel (0) target = $region61
  $region60: #{mobile_bottleneck.2} parent=0 // pred_region
    _
  $region61: #{mobile_bottleneck.2} parent=0 // pred_fallthru
    _
  // Predicated region
  $region62: #{mobile_bottleneck.2} parent=0 // pred_check
    _
  $region63: #{mobile_bottleneck.2} parent=0 // pred_check_branch
    %1714 = sbr.rel (0) target = $region65
  $region64: #{mobile_bottleneck.2} parent=0 // pred_region
    _
  $region65: #{mobile_bottleneck.2} parent=0 // pred_fallthru
    _

</llo_original>
